<compile_context>
chip_gen: v7x
topology: tpu7x:2x2x1
jax: 0.10.0
libtpu: 0.0.40
codegen_flags: <defaults>
</compile_context>

<pallas_src>
import math

import numpy as np

import jax
import jax.numpy as jnp
from jax import lax
from jax.experimental import pallas as pl
from jax.experimental.pallas import tpu as pltpu


PAD = 0          # Constants.PAD
_LN_EPS = 1e-5   # torch.nn.LayerNorm default
# Scoped-VMEM budget: ~3/4 of v7x's 64 MiB physical VMEM, far under v5e/v6e's 128 MiB.
_VMEM_LIMIT_BYTES = 48 * 1024 * 1024


def _q_tile(length):
    """Query-tile size for the attention kernel.

    Whole sequence when it comfortably fits; otherwise 256-row blocked queries
    (256 is a multiple of 8, so a partial last tile is still a legal block; OOB
    query rows never contaminate valid rows since every op is row-wise on the
    query axis and their stores are dropped by the pipeline)."""
    return length if length <= 256 else 256


# ---------------------------------------------------------------------------
# Pallas kernels
# ---------------------------------------------------------------------------

def attention_block(x, key_mask, row_mask, w_q, b_q, w_kv, b_kv, w_o, b_o,
                    gamma, beta, n_head, d_k):
    """Fused self-attention block, grid = (batch, query_tiles):

      QKV projection (bf16 MXU, f32 acc) -> per-head softmax(QK^T/sqrt(d_k))
      with key mask -> heads staged into a (tq, HD) scratch -> ONE output
      projection -> + bias + residual -> LayerNorm -> masked_fill(pad rows, 0).
    """
    B, L, D = x.shape
    HD = n_head * d_k
    inv_temp = 1.0 / math.sqrt(d_k)
    tq = _q_tile(L)
    nq = pl.cdiv(L, tq)

    def kernel(xq_ref, xkv_ref, km_ref, rm_ref, wq_ref, bq_ref, wkv_ref,
               bkv_ref, wo_ref, bo_ref, g_ref, be_ref, o_ref, attn_scr):
        xq = xq_ref[0]                       # (tq, D) bf16: query rows + residual
        xkv = xkv_ref[0]                     # (L, D)  bf16: full sequence for K/V
        # key-mask bias hoisted out of the head loop (one (1,L) select total)
        key_bias = jnp.where(km_ref[0] > 0.5, -1e9, 0.0)          # (1, L) f32

        # fused Q / KV projections: bf16 operands, f32 accumulation on the MXU
        q_all = (jnp.dot(xq, wq_ref[...], preferred_element_type=jnp.float32)
                 + bq_ref[...]).astype(jnp.bfloat16)              # (tq, HD)
        kv_all = (jnp.dot(xkv, wkv_ref[...], preferred_element_type=jnp.float32)
                  + bkv_ref[...]).astype(jnp.bfloat16)            # (L, 2*HD)

        # Per-head attention.  Each head writes its context into a disjoint
        # lane slice of attn_scr (lane-aligned whenever d_k % 128 == 0), so
        # only one head's (tq,L) temporaries are live at a time; the output
        # projection is then a single full-width matmul.
        for h in range(n_head):
            q_h = q_all[:, h * d_k:(h + 1) * d_k]
            k_h = kv_all[:, h * d_k:(h + 1) * d_k]
            v_h = kv_all[:, HD + h * d_k:HD + (h + 1) * d_k]
            s = lax.dot_general(q_h, k_h, (((1,), (1,)), ((), ())),
                                preferred_element_type=jnp.float32)   # (tq, L)
            s = s * inv_temp + key_bias
            s_max = jnp.max(s, axis=-1, keepdims=True)
            e = jnp.exp(s - s_max)
            denom = jnp.sum(e, axis=-1, keepdims=True)
            # EUP reciprocal (use approx=False for strict parity vs. torch)
            p = e * pl.reciprocal(denom, approx=True)
            o_h = jnp.dot(p.astype(jnp.bfloat16), v_h,
                          preferred_element_type=jnp.float32)         # (tq, d_k)
            attn_scr[:, h * d_k:(h + 1) * d_k] = o_h.astype(attn_scr.dtype)

        # single (tq,HD)@(HD,D) output projection over all heads
        y = jnp.dot(attn_scr[...], wo_ref[...],
                    preferred_element_type=jnp.float32)
        y = y + bo_ref[...] + xq.astype(jnp.float32)                  # residual
        mean = jnp.mean(y, axis=-1, keepdims=True)
        var = jnp.mean((y - mean) ** 2, axis=-1, keepdims=True)
        y = (y - mean) * lax.rsqrt(var + _LN_EPS)
        y = y * g_ref[...] + be_ref[...]
        y = jnp.where(rm_ref[0] > 0.5, 0.0, y)                        # masked_fill
        o_ref[0] = y.astype(o_ref.dtype)

    return pl.pallas_call(
        kernel,
        out_shape=jax.ShapeDtypeStruct((B, L, D), x.dtype),
        grid=(B, nq),
        in_specs=[
            pl.BlockSpec((1, tq, D), lambda b, q: (b, q, 0)),   # query rows/residual
            pl.BlockSpec((1, L, D), lambda b, q: (b, 0, 0)),    # full seq for K/V
            pl.BlockSpec((1, 1, L), lambda b, q: (b, 0, 0)),    # key mask (lane-dense)
            pl.BlockSpec((1, tq, 1), lambda b, q: (b, q, 0)),   # row (pad) mask
            pl.BlockSpec((D, HD), lambda b, q: (0, 0)),         # w_q  (bf16)
            pl.BlockSpec((1, HD), lambda b, q: (0, 0)),
            pl.BlockSpec((D, 2 * HD), lambda b, q: (0, 0)),     # w_kv (bf16)
            pl.BlockSpec((1, 2 * HD), lambda b, q: (0, 0)),
            pl.BlockSpec((HD, D), lambda b, q: (0, 0)),         # w_o  (bf16)
            pl.BlockSpec((1, D), lambda b, q: (0, 0)),
            pl.BlockSpec((1, D), lambda b, q: (0, 0)),
            pl.BlockSpec((1, D), lambda b, q: (0, 0)),
        ],
        out_specs=pl.BlockSpec((1, tq, D), lambda b, q: (b, q, 0)),
        scratch_shapes=[pltpu.VMEM((tq, HD), jnp.bfloat16)],
        compiler_params=pltpu.CompilerParams(
            dimension_semantics=("parallel", "parallel"),
            vmem_limit_bytes=_VMEM_LIMIT_BYTES),
    )(x, x, key_mask, row_mask, w_q, b_q, w_kv, b_kv, w_o, b_o, gamma, beta)


def conv_ffn_block(x, row_mask, w1, b1, w2, b2, gamma, beta, k1, k2):
    """Fused position-wise conv feed-forward (one grid step per batch element):

      im2col built in VMEM (halo handled in-kernel, no XLA pad) ->
      conv1d(k1) as ONE (L, k1*D)@(k1*D, d_inner) matmul -> ReLU ->
      conv1d(k2) -> + residual -> LayerNorm -> masked_fill(pad rows, 0).

    w1: (k1*D, d_inner) bf16 (im2col-ready), w2: (k2, d_inner, D) bf16.
    """
    B, L, D = x.shape
    d_inner = w1.shape[1]
    p1 = (k1 - 1) // 2
    p2 = (k2 - 1) // 2

    def kernel(x_ref, rm_ref, w1_ref, b1_ref, w2_ref, b2_ref, g_ref, be_ref,
               o_ref, col_scr):
        x_b = x_ref[0]                                   # (L, D) bf16
        # im2col in VMEM: column block k holds x shifted by (k - p1) rows,
        # zero outside the sequence (halo handled here, not via an HBM pad).
        col_scr[...] = jnp.zeros_like(col_scr)
        for k in range(k1):
            off = k - p1
            i0 = max(0, -off)
            j0 = max(0, off)
            n = L - abs(off)
            if n > 0:
                col_scr[i0:i0 + n, k * D:(k + 1) * D] = x_b[j0:j0 + n, :]
        # conv1 as a single long-contraction matmul (bf16 operands, f32 acc)
        h = jnp.dot(col_scr[...], w1_ref[...],
                    preferred_element_type=jnp.float32)
        h = jnp.maximum(h + b1_ref[...], 0.0).astype(jnp.bfloat16)   # (L, d_inner)
        # conv2 (kernel size 1 in FastSpeech; general odd k2 via zero pad)
        if p2 > 0:
            zpad = jnp.zeros((p2, d_inner), h.dtype)
            h_pad = jnp.concatenate([zpad, h, zpad], axis=0)
        else:
            h_pad = h
        acc = jnp.zeros((L, D), jnp.float32)
        for k in range(k2):
            acc = acc + jnp.dot(h_pad[k:k + L, :], w2_ref[k],
                                preferred_element_type=jnp.float32)
        y = acc + b2_ref[...] + x_b.astype(jnp.float32)              # residual
        mean = jnp.mean(y, axis=-1, keepdims=True)
        var = jnp.mean((y - mean) ** 2, axis=-1, keepdims=True)
        y = (y - mean) * lax.rsqrt(var + _LN_EPS)
        y = y * g_ref[...] + be_ref[...]
        y = jnp.where(rm_ref[0] > 0.5, 0.0, y)                       # masked_fill
        o_ref[0] = y.astype(o_ref.dtype)

    return pl.pallas_call(
        kernel,
        out_shape=jax.ShapeDtypeStruct((B, L, D), x.dtype),
        grid=(B,),
        in_specs=[
            pl.BlockSpec((1, L, D), lambda b: (b, 0, 0)),
            pl.BlockSpec((1, L, 1), lambda b: (b, 0, 0)),
            pl.BlockSpec((k1 * D, d_inner), lambda b: (0, 0)),
            pl.BlockSpec((1, d_inner), lambda b: (0, 0)),
            pl.BlockSpec((k2, d_inner, D), lambda b: (0, 0, 0)),
            pl.BlockSpec((1, D), lambda b: (0, 0)),
            pl.BlockSpec((1, D), lambda b: (0, 0)),
            pl.BlockSpec((1, D), lambda b: (0, 0)),
        ],
        out_specs=pl.BlockSpec((1, L, D), lambda b: (b, 0, 0)),
        scratch_shapes=[pltpu.VMEM((L, k1 * D), jnp.bfloat16)],
        compiler_params=pltpu.CompilerParams(
            dimension_semantics=("parallel",),
            vmem_limit_bytes=_VMEM_LIMIT_BYTES),
    )(x, row_mask, w1, b1, w2, b2, gamma, beta)


# ---------------------------------------------------------------------------
# Sinusoid position encoding (matches the reference numpy implementation)
# ---------------------------------------------------------------------------

def get_sinusoid_encoding_table(n_position, d_hid, padding_idx=None):
    def cal_angle(position, hid_idx):
        return position / np.power(10000, 2 * (hid_idx // 2) / d_hid)

    table = np.array(
        [[cal_angle(pos, j) for j in range(d_hid)] for pos in range(n_position)],
        dtype=np.float64)
    table[:, 0::2] = np.sin(table[:, 0::2])
    table[:, 1::2] = np.cos(table[:, 1::2])
    if padding_idx is not None:
        table[padding_idx] = 0.0
    return jnp.asarray(table, jnp.float32)


# ---------------------------------------------------------------------------
# Deterministic parameter initialization (synthetic; shapes from __init__)
# ---------------------------------------------------------------------------

def _xavier(key, d_in, d_out):
    limit = math.sqrt(6.0 / (d_in + d_out))
    return jax.random.uniform(key, (d_in, d_out), jnp.float32, -limit, limit)


def _conv_weight(key, c_in, c_out, ksize):
    limit = math.sqrt(1.0 / (c_in * ksize))
    w = jax.random.uniform(key, (c_out, c_in, ksize), jnp.float32, -limit, limit)
    # torch Conv1d weight (O, C_in, K) -> per-tap matmul weight (K, C_in, O)
    return jnp.transpose(w, (2, 1, 0))


def init_encoder_params(key, config, n_src_vocab):
    t = config["transformer"]
    d_model = t["encoder_hidden"]
    n_layers = t["encoder_layer"]
    n_head = t["encoder_head"]
    d_k = d_model // n_head
    d_inner = t["conv_filter_size"]
    ks = t["conv_kernel_size"]
    n_position = config["max_seq_len"] + 1

    keys = iter(jax.random.split(key, 1 + n_layers * 6))

    emb = 0.02 * jax.random.normal(next(keys), (n_src_vocab, d_model), jnp.float32)
    emb = emb.at[PAD].set(0.0)   # nn.Embedding padding_idx row

    params = {
        "emb": emb,
        "pos_enc": get_sinusoid_encoding_table(n_position, d_model)[None],
        "layers": [],
    }
    HD = n_head * d_k
    for _ in range(n_layers):
        wq = _xavier(next(keys), d_model, HD)
        wk = _xavier(next(keys), d_model, HD)
        wv = _xavier(next(keys), d_model, HD)
        conv1 = _conv_weight(next(keys), d_model, d_inner, ks[0])   # (K1, D, d_inner)
        conv2 = _conv_weight(next(keys), d_inner, d_model, ks[1])   # (K2, d_inner, D)
        layer = {
            # matmul weights stored bf16 (MXU-rate + HBM/VMEM savings)
            "w_q": wq.astype(jnp.bfloat16),
            "b_q": jnp.zeros((1, HD), jnp.float32),
            "w_kv": jnp.concatenate([wk, wv], axis=1).astype(jnp.bfloat16),
            "b_kv": jnp.zeros((1, 2 * HD), jnp.float32),
            "w_o": _xavier(next(keys), HD, d_model).astype(jnp.bfloat16),
            "b_o": jnp.zeros((1, d_model), jnp.float32),
            "ln1_g": jnp.ones((1, d_model), jnp.float32),
            "ln1_b": jnp.zeros((1, d_model), jnp.float32),
            # conv1 stored im2col-ready: (K1*D, d_inner)
            "conv1_w": conv1.reshape(ks[0] * d_model, d_inner).astype(jnp.bfloat16),
            "conv1_b": jnp.zeros((1, d_inner), jnp.float32),
            "conv2_w": conv2.astype(jnp.bfloat16),                   # (K2, d_inner, D)
            "conv2_b": jnp.zeros((1, d_model), jnp.float32),
            "ln2_g": jnp.ones((1, d_model), jnp.float32),
            "ln2_b": jnp.zeros((1, d_model), jnp.float32),
        }
        params["layers"].append(layer)
    return params


# ---------------------------------------------------------------------------
# Encoder forward (glue in plain JAX, compute in Pallas)
# ---------------------------------------------------------------------------

def encoder_forward(params, src_seq, mask, config, training=False):
    t = config["transformer"]
    d_model = t["encoder_hidden"]
    n_head = t["encoder_head"]
    d_k = d_model // n_head
    ks = t["conv_kernel_size"]
    max_seq_len = config["max_seq_len"]

    B, L = src_seq.shape

    # word embedding + sinusoid positional encoding (XLA gather + add)
    word_emb = jnp.take(params["emb"], src_seq, axis=0)              # (B, L, D)
    if (not training) and L > max_seq_len:
        pos = get_sinusoid_encoding_table(L, d_model)[:L, :]
        enc_output = word_emb + pos[None, :, :]
    else:
        enc_output = word_emb + params["pos_enc"][:, :L, :]
    # inter-kernel activation kept bf16 (halves HBM traffic); all matmuls
    # accumulate in f32, LayerNorm/softmax statistics stay f32 in-kernel.
    enc_output = enc_output.astype(jnp.bfloat16)

    mask_f = mask.astype(jnp.float32)
    key_mask = mask_f[:, None, :]    # (B, 1, L): masks attention keys
    row_mask = mask_f[:, :, None]    # (B, L, 1): masked_fill of padded rows
    # TODO(synk): row_mask kept as a tiny (B,L,1) input rather than derived
    # in-kernel via a lane->sublane transpose of key_mask (last micro-opt).

    for p in params["layers"]:
        # fused QKV + attention + output proj + residual + LayerNorm + mask
        enc_output = attention_block(enc_output, key_mask, row_mask,
                                     p["w_q"], p["b_q"], p["w_kv"], p["b_kv"],
                                     p["w_o"], p["b_o"],
                                     p["ln1_g"], p["ln1_b"], n_head, d_k)
        # fused conv FFN + residual + LayerNorm + mask
        enc_output = conv_ffn_block(enc_output, row_mask,
                                    p["conv1_w"], p["conv1_b"],
                                    p["conv2_w"], p["conv2_b"],
                                    p["ln2_g"], p["ln2_b"], ks[0], ks[1])
    return enc_output


# ---------------------------------------------------------------------------
# Main
# ---------------------------------------------------------------------------

if __name__ == "__main__":
    # Toy shapes for the runnable demo.  (Production FastSpeech sizes —
    # d_model=256, d_inner=1024, d_k=128 — are lane-aligned as the perf review
    # recommends; the toy d_model=32 is intentionally small.)
    config = {
        "max_seq_len": 16,
        "transformer": {
            "encoder_hidden": 32,
            "encoder_layer": 2,
            "encoder_head": 2,
            "conv_filter_size": 64,
            "conv_kernel_size": [9, 1],
            "encoder_dropout": 0.2,
        },
    }
    n_src_vocab = 40 + 1      # stand-in for len(symbols) + 1
    B, L = 2, 8
    d_model = config["transformer"]["encoder_hidden"]

    root = jax.random.PRNGKey(0)
    kp, kseq = jax.random.split(root)
    params = init_encoder_params(kp, config, n_src_vocab)

    src_seq = jax.random.randint(kseq, (B, L), 1, n_src_vocab, dtype=jnp.int32)
    src_seq = src_seq.at[1, L - 3:].set(PAD)       # last 3 frames of elem 1 padded
    mask = (src_seq == PAD)                        # True where padded

    enc_out = encoder_forward(params, src_seq, mask, config)
    jax.block_until_ready(enc_out)

    assert enc_out.shape == (B, L, d_model)
    assert bool(jnp.all(jnp.isfinite(enc_out.astype(jnp.float32))))
    # padded positions are zeroed by the masked_fill fused into the last block
    assert bool(jnp.all(enc_out[1, L - 3:, :] == 0.0))

    print("KERNEL_OK")
</pallas_src>

<mosaic_0001>
module attributes {stable_mosaic.version = 11 : i64} {
  func.func @kernel(%arg0: i32, %arg1: i32, %arg2: memref<1x8x32xbf16, #tpu.memory_space<vmem>>, %arg3: memref<1x8x32xbf16, #tpu.memory_space<vmem>>, %arg4: memref<1x1x8xf32, #tpu.memory_space<vmem>>, %arg5: memref<1x8x1xf32, #tpu.memory_space<vmem>>, %arg6: memref<32x32xbf16, #tpu.memory_space<vmem>>, %arg7: memref<1x32xf32, #tpu.memory_space<vmem>>, %arg8: memref<32x64xbf16, #tpu.memory_space<vmem>>, %arg9: memref<1x64xf32, #tpu.memory_space<vmem>>, %arg10: memref<32x32xbf16, #tpu.memory_space<vmem>>, %arg11: memref<1x32xf32, #tpu.memory_space<vmem>>, %arg12: memref<1x32xf32, #tpu.memory_space<vmem>>, %arg13: memref<1x32xf32, #tpu.memory_space<vmem>>, %arg14: memref<1x8x32xbf16, #tpu.memory_space<vmem>>, %arg15: memref<8x32xbf16, #tpu.memory_space<vmem>>) attributes {dimension_semantics = [#tpu.dimension_semantics<parallel>, #tpu.dimension_semantics<parallel>], iteration_bounds = array<i64: 2, 1>, scalar_prefetch = 0 : i64, scratch_operands = 1 : i64, tpu.core_type = #tpu.core_type<tc>, window_params = [{transform_indices = @transform_0, window_bounds = array<i64: 1, 8, 32>}, {transform_indices = @transform_1, window_bounds = array<i64: 1, 8, 32>}, {transform_indices = @transform_2, window_bounds = array<i64: 1, 1, 8>}, {transform_indices = @transform_3, window_bounds = array<i64: 1, 8, 1>}, {pipeline_mode = #tpu.pipeline_mode<synchronous>, transform_indices = @transform_4, window_bounds = array<i64: 32, 32>}, {pipeline_mode = #tpu.pipeline_mode<synchronous>, transform_indices = @transform_5, window_bounds = array<i64: 1, 32>}, {pipeline_mode = #tpu.pipeline_mode<synchronous>, transform_indices = @transform_6, window_bounds = array<i64: 32, 64>}, {pipeline_mode = #tpu.pipeline_mode<synchronous>, transform_indices = @transform_7, window_bounds = array<i64: 1, 64>}, {pipeline_mode = #tpu.pipeline_mode<synchronous>, transform_indices = @transform_8, window_bounds = array<i64: 32, 32>}, {pipeline_mode = #tpu.pipeline_mode<synchronous>, transform_indices = @transform_9, window_bounds = array<i64: 1, 32>}, {pipeline_mode = #tpu.pipeline_mode<synchronous>, transform_indices = @transform_10, window_bounds = array<i64: 1, 32>}, {pipeline_mode = #tpu.pipeline_mode<synchronous>, transform_indices = @transform_11, window_bounds = array<i64: 1, 32>}, {transform_indices = @transform_12, window_bounds = array<i64: 1, 8, 32>}]} {
    %c0 = arith.constant 0 : index
    %c0_0 = arith.constant 0 : index
    %c0_1 = arith.constant 0 : index
    %0 = vector.load %arg2[%c0, %c0_0, %c0_1] : memref<1x8x32xbf16, #tpu.memory_space<vmem>>, vector<1x8x32xbf16>
    %1 = vector.shape_cast %0 : vector<1x8x32xbf16> to vector<8x32xbf16>
    %c0_2 = arith.constant 0 : index
    %c0_3 = arith.constant 0 : index
    %c0_4 = arith.constant 0 : index
    %2 = vector.load %arg3[%c0_2, %c0_3, %c0_4] : memref<1x8x32xbf16, #tpu.memory_space<vmem>>, vector<1x8x32xbf16>
    %3 = vector.shape_cast %2 : vector<1x8x32xbf16> to vector<8x32xbf16>
    %c0_5 = arith.constant 0 : index
    %c0_6 = arith.constant 0 : index
    %c0_7 = arith.constant 0 : index
    %4 = vector.load %arg4[%c0_5, %c0_6, %c0_7] : memref<1x1x8xf32, #tpu.memory_space<vmem>>, vector<1x1x8xf32>
    %5 = vector.shape_cast %4 : vector<1x1x8xf32> to vector<1x8xf32>
    %cst = arith.constant 5.000000e-01 : f32
    %6 = vector.broadcast %cst : f32 to vector<1x8xf32>
    %7 = arith.cmpf ogt, %5, %6 : vector<1x8xf32>
    %cst_8 = arith.constant -1.000000e+09 : f32
    %cst_9 = arith.constant 0.000000e+00 : f32
    %8 = vector.broadcast %cst_8 : f32 to vector<1x8xf32>
    %9 = vector.broadcast %cst_9 : f32 to vector<1x8xf32>
    %10 = arith.select %7, %8, %9 : vector<1x8xi1>, vector<1x8xf32>
    %c0_10 = arith.constant 0 : index
    %c0_11 = arith.constant 0 : index
    %11 = vector.load %arg6[%c0_10, %c0_11] : memref<32x32xbf16, #tpu.memory_space<vmem>>, vector<32x32xbf16>
    %cst_12 = arith.constant dense<0.000000e+00> : vector<8x32xf32>
    %12 = tpu.matmul %1, %11, %cst_12 {dimension_numbers = #tpu.dot_dimension_numbers<[1], [0], [0], [1], [0, 0, 1, 1], [], []>} : vector<8x32xbf16>, vector<32x32xbf16>, vector<8x32xf32> -> vector<8x32xf32>
    %c0_13 = arith.constant 0 : index
    %c0_14 = arith.constant 0 : index
    %13 = vector.load %arg7[%c0_13, %c0_14] : memref<1x32xf32, #tpu.memory_space<vmem>>, vector<1x32xf32>
    %14 = vector.broadcast %13 : vector<1x32xf32> to vector<8x32xf32>
    %15 = arith.addf %12, %14 : vector<8x32xf32>
    %16 = arith.truncf %15 : vector<8x32xf32> to vector<8x32xbf16>
    %c0_15 = arith.constant 0 : index
    %c0_16 = arith.constant 0 : index
    %17 = vector.load %arg8[%c0_15, %c0_16] : memref<32x64xbf16, #tpu.memory_space<vmem>>, vector<32x64xbf16>
    %cst_17 = arith.constant dense<0.000000e+00> : vector<8x64xf32>
    %18 = tpu.matmul %3, %17, %cst_17 {dimension_numbers = #tpu.dot_dimension_numbers<[1], [0], [0], [1], [0, 0, 1, 1], [], []>} : vector<8x32xbf16>, vector<32x64xbf16>, vector<8x64xf32> -> vector<8x64xf32>
    %c0_18 = arith.constant 0 : index
    %c0_19 = arith.constant 0 : index
    %19 = vector.load %arg9[%c0_18, %c0_19] : memref<1x64xf32, #tpu.memory_space<vmem>>, vector<1x64xf32>
    %20 = vector.broadcast %19 : vector<1x64xf32> to vector<8x64xf32>
    %21 = arith.addf %18, %20 : vector<8x64xf32>
    %22 = arith.truncf %21 : vector<8x64xf32> to vector<8x64xbf16>
    %23 = vector.extract_strided_slice %16 {offsets = [0, 0], sizes = [8, 16], strides = [1, 1]} : vector<8x32xbf16> to vector<8x16xbf16>
    %24 = vector.extract_strided_slice %22 {offsets = [0, 0], sizes = [8, 16], strides = [1, 1]} : vector<8x64xbf16> to vector<8x16xbf16>
    %25 = vector.extract_strided_slice %22 {offsets = [0, 32], sizes = [8, 16], strides = [1, 1]} : vector<8x64xbf16> to vector<8x16xbf16>
    %cst_20 = arith.constant dense<0.000000e+00> : vector<8x8xf32>
    %26 = tpu.matmul %23, %24, %cst_20 {dimension_numbers = #tpu.dot_dimension_numbers<[1], [1], [0], [0], [0, 0, 1, 0], [], []>} : vector<8x16xbf16>, vector<8x16xbf16>, vector<8x8xf32> -> vector<8x8xf32>
    %cst_21 = arith.constant 2.500000e-01 : f32
    %27 = vector.broadcast %cst_21 : f32 to vector<8x8xf32>
    %28 = arith.mulf %26, %27 : vector<8x8xf32>
    %29 = vector.broadcast %10 : vector<1x8xf32> to vector<8x8xf32>
    %30 = arith.addf %28, %29 : vector<8x8xf32>
    %cst_22 = arith.constant dense<0xFF800000> : vector<8xf32>
    %31 = vector.multi_reduction <maximumf>, %30, %cst_22 [1] : vector<8x8xf32> to vector<8xf32>
    %32 = vector.shape_cast %31 : vector<8xf32> to vector<8x1xf32>
    %33 = vector.broadcast %32 : vector<8x1xf32> to vector<8x8xf32>
    %34 = arith.subf %30, %33 : vector<8x8xf32>
    %35 = math.exp %34 : vector<8x8xf32>
    %cst_23 = arith.constant dense<0.000000e+00> : vector<8xf32>
    %36 = vector.multi_reduction <add>, %35, %cst_23 [1] : vector<8x8xf32> to vector<8xf32>
    %37 = vector.shape_cast %36 : vector<8xf32> to vector<8x1xf32>
    %38 = tpu.reciprocal %37 {approx = true} : vector<8x1xf32> -> vector<8x1xf32>
    %39 = vector.broadcast %38 : vector<8x1xf32> to vector<8x8xf32>
    %40 = arith.mulf %35, %39 : vector<8x8xf32>
    %41 = arith.truncf %40 : vector<8x8xf32> to vector<8x8xbf16>
    %cst_24 = arith.constant dense<0.000000e+00> : vector<8x16xf32>
    %42 = tpu.matmul %41, %25, %cst_24 {dimension_numbers = #tpu.dot_dimension_numbers<[1], [0], [0], [1], [0, 0, 1, 1], [], []>} : vector<8x8xbf16>, vector<8x16xbf16>, vector<8x16xf32> -> vector<8x16xf32>
    %43 = arith.truncf %42 : vector<8x16xf32> to vector<8x16xbf16>
    %c0_25 = arith.constant 0 : index
    %c0_26 = arith.constant 0 : index
    %44 = vector.load %arg15[%c0_25, %c0_26] : memref<8x32xbf16, #tpu.memory_space<vmem>>, vector<8x16xbf16>
    tpu.vector_store %arg15[%c0_25, %c0_26], %43 {strides = array<i32>} : memref<8x32xbf16, #tpu.memory_space<vmem>>, vector<8x16xbf16>,
    %45 = vector.extract_strided_slice %16 {offsets = [0, 16], sizes = [8, 16], strides = [1, 1]} : vector<8x32xbf16> to vector<8x16xbf16>
    %46 = vector.extract_strided_slice %22 {offsets = [0, 16], sizes = [8, 16], strides = [1, 1]} : vector<8x64xbf16> to vector<8x16xbf16>
    %47 = vector.extract_strided_slice %22 {offsets = [0, 48], sizes = [8, 16], strides = [1, 1]} : vector<8x64xbf16> to vector<8x16xbf16>
    %cst_27 = arith.constant dense<0.000000e+00> : vector<8x8xf32>
    %48 = tpu.matmul %45, %46, %cst_27 {dimension_numbers = #tpu.dot_dimension_numbers<[1], [1], [0], [0], [0, 0, 1, 0], [], []>} : vector<8x16xbf16>, vector<8x16xbf16>, vector<8x8xf32> -> vector<8x8xf32>
    %cst_28 = arith.constant 2.500000e-01 : f32
    %49 = vector.broadcast %cst_28 : f32 to vector<8x8xf32>
    %50 = arith.mulf %48, %49 : vector<8x8xf32>
    %51 = vector.broadcast %10 : vector<1x8xf32> to vector<8x8xf32>
    %52 = arith.addf %50, %51 : vector<8x8xf32>
    %cst_29 = arith.constant dense<0xFF800000> : vector<8xf32>
    %53 = vector.multi_reduction <maximumf>, %52, %cst_29 [1] : vector<8x8xf32> to vector<8xf32>
    %54 = vector.shape_cast %53 : vector<8xf32> to vector<8x1xf32>
    %55 = vector.broadcast %54 : vector<8x1xf32> to vector<8x8xf32>
    %56 = arith.subf %52, %55 : vector<8x8xf32>
    %57 = math.exp %56 : vector<8x8xf32>
    %cst_30 = arith.constant dense<0.000000e+00> : vector<8xf32>
    %58 = vector.multi_reduction <add>, %57, %cst_30 [1] : vector<8x8xf32> to vector<8xf32>
    %59 = vector.shape_cast %58 : vector<8xf32> to vector<8x1xf32>
    %60 = tpu.reciprocal %59 {approx = true} : vector<8x1xf32> -> vector<8x1xf32>
    %61 = vector.broadcast %60 : vector<8x1xf32> to vector<8x8xf32>
    %62 = arith.mulf %57, %61 : vector<8x8xf32>
    %63 = arith.truncf %62 : vector<8x8xf32> to vector<8x8xbf16>
    %cst_31 = arith.constant dense<0.000000e+00> : vector<8x16xf32>
    %64 = tpu.matmul %63, %47, %cst_31 {dimension_numbers = #tpu.dot_dimension_numbers<[1], [0], [0], [1], [0, 0, 1, 1], [], []>} : vector<8x8xbf16>, vector<8x16xbf16>, vector<8x16xf32> -> vector<8x16xf32>
    %65 = arith.truncf %64 : vector<8x16xf32> to vector<8x16xbf16>
    %c0_32 = arith.constant 0 : index
    %c16 = arith.constant 16 : index
    %66 = vector.load %arg15[%c0_32, %c16] : memref<8x32xbf16, #tpu.memory_space<vmem>>, vector<8x16xbf16>
    tpu.vector_store %arg15[%c0_32, %c16], %65 {strides = array<i32>} : memref<8x32xbf16, #tpu.memory_space<vmem>>, vector<8x16xbf16>,
    %c0_33 = arith.constant 0 : index
    %c0_34 = arith.constant 0 : index
    %67 = vector.load %arg15[%c0_33, %c0_34] : memref<8x32xbf16, #tpu.memory_space<vmem>>, vector<8x32xbf16>
    %c0_35 = arith.constant 0 : index
    %c0_36 = arith.constant 0 : index
    %68 = vector.load %arg10[%c0_35, %c0_36] : memref<32x32xbf16, #tpu.memory_space<vmem>>, vector<32x32xbf16>
    %cst_37 = arith.constant dense<0.000000e+00> : vector<8x32xf32>
    %69 = tpu.matmul %67, %68, %cst_37 {dimension_numbers = #tpu.dot_dimension_numbers<[1], [0], [0], [1], [0, 0, 1, 1], [], []>} : vector<8x32xbf16>, vector<32x32xbf16>, vector<8x32xf32> -> vector<8x32xf32>
    %c0_38 = arith.constant 0 : index
    %c0_39 = arith.constant 0 : index
    %70 = vector.load %arg11[%c0_38, %c0_39] : memref<1x32xf32, #tpu.memory_space<vmem>>, vector<1x32xf32>
    %71 = vector.broadcast %70 : vector<1x32xf32> to vector<8x32xf32>
    %72 = arith.addf %69, %71 : vector<8x32xf32>
    %73 = arith.extf %1 : vector<8x32xbf16> to vector<8x32xf32>
    %74 = arith.addf %72, %73 : vector<8x32xf32>
    %cst_40 = arith.constant dense<0.000000e+00> : vector<8xf32>
    %75 = vector.multi_reduction <add>, %74, %cst_40 [1] : vector<8x32xf32> to vector<8xf32>
    %76 = vector.shape_cast %75 : vector<8xf32> to vector<8x1xf32>
    %cst_41 = arith.constant 3.200000e+01 : f32
    %77 = vector.broadcast %cst_41 : f32 to vector<8x1xf32>
    %78 = arith.divf %76, %77 : vector<8x1xf32>
    %79 = vector.broadcast %78 : vector<8x1xf32> to vector<8x32xf32>
    %80 = arith.subf %74, %79 : vector<8x32xf32>
    %81 = arith.mulf %80, %80 : vector<8x32xf32>
    %cst_42 = arith.constant dense<0.000000e+00> : vector<8xf32>
    %82 = vector.multi_reduction <add>, %81, %cst_42 [1] : vector<8x32xf32> to vector<8xf32>
    %83 = vector.shape_cast %82 : vector<8xf32> to vector<8x1xf32>
    %cst_43 = arith.constant 3.200000e+01 : f32
    %84 = vector.broadcast %cst_43 : f32 to vector<8x1xf32>
    %85 = arith.divf %83, %84 : vector<8x1xf32>
    %86 = vector.broadcast %78 : vector<8x1xf32> to vector<8x32xf32>
    %87 = arith.subf %74, %86 : vector<8x32xf32>
    %cst_44 = arith.constant 9.99999974E-6 : f32
    %88 = vector.broadcast %cst_44 : f32 to vector<8x1xf32>
    %89 = arith.addf %85, %88 : vector<8x1xf32>
    %90 = math.rsqrt %89 : vector<8x1xf32>
    %91 = vector.broadcast %90 : vector<8x1xf32> to vector<8x32xf32>
    %92 = arith.mulf %87, %91 : vector<8x32xf32>
    %c0_45 = arith.constant 0 : index
    %c0_46 = arith.constant 0 : index
    %93 = vector.load %arg12[%c0_45, %c0_46] : memref<1x32xf32, #tpu.memory_space<vmem>>, vector<1x32xf32>
    %94 = vector.broadcast %93 : vector<1x32xf32> to vector<8x32xf32>
    %95 = arith.mulf %92, %94 : vector<8x32xf32>
    %c0_47 = arith.constant 0 : index
    %c0_48 = arith.constant 0 : index
    %96 = vector.load %arg13[%c0_47, %c0_48] : memref<1x32xf32, #tpu.memory_space<vmem>>, vector<1x32xf32>
    %97 = vector.broadcast %96 : vector<1x32xf32> to vector<8x32xf32>
    %98 = arith.addf %95, %97 : vector<8x32xf32>
    %c0_49 = arith.constant 0 : index
    %c0_50 = arith.constant 0 : index
    %c0_51 = arith.constant 0 : index
    %99 = vector.load %arg5[%c0_49, %c0_50, %c0_51] : memref<1x8x1xf32, #tpu.memory_space<vmem>>, vector<1x8x1xf32>
    %100 = vector.shape_cast %99 : vector<1x8x1xf32> to vector<8x1xf32>
    %cst_52 = arith.constant 5.000000e-01 : f32
    %101 = vector.broadcast %cst_52 : f32 to vector<8x1xf32>
    %102 = arith.cmpf ogt, %100, %101 : vector<8x1xf32>
    %cst_53 = arith.constant 0.000000e+00 : f32
    %103 = vector.shape_cast %102 : vector<8x1xi1> to vector<8x1xi1>
    %104 = vector.broadcast %103 : vector<8x1xi1> to vector<8x32xi1>
    %105 = vector.broadcast %cst_53 : f32 to vector<8x32xf32>
    %106 = arith.select %104, %105, %98 : vector<8x32xi1>, vector<8x32xf32>
    %107 = arith.truncf %106 : vector<8x32xf32> to vector<8x32xbf16>
    %c0_54 = arith.constant 0 : index
    %c0_55 = arith.constant 0 : index
    %c0_56 = arith.constant 0 : index
    %108 = vector.load %arg14[%c0_54, %c0_55, %c0_56] : memref<1x8x32xbf16, #tpu.memory_space<vmem>>, vector<1x8x32xbf16>
    %109 = vector.shape_cast %108 : vector<1x8x32xbf16> to vector<8x32xbf16>
    %110 = vector.shape_cast %107 : vector<8x32xbf16> to vector<1x8x32xbf16>
    tpu.vector_store %arg14[%c0_54, %c0_55, %c0_56], %110 {strides = array<i32>} : memref<1x8x32xbf16, #tpu.memory_space<vmem>>, vector<1x8x32xbf16>,
    return
  }
  func.func @transform_0(%arg0: i32, %arg1: i32) -> (i32, i32, i32) {
    %c0_i32 = arith.constant 0 : i32
    %c0_i32_0 = arith.constant 0 : i32
    return %arg0, %arg1, %c0_i32 : i32, i32, i32
  }
  func.func @transform_1(%arg0: i32, %arg1: i32) -> (i32, i32, i32) {
    %c0_i32 = arith.constant 0 : i32
    %c0_i32_0 = arith.constant 0 : i32
    %c0_i32_1 = arith.constant 0 : i32
    return %arg0, %c0_i32, %c0_i32_0 : i32, i32, i32
  }
  func.func @transform_2(%arg0: i32, %arg1: i32) -> (i32, i32, i32) {
    %c0_i32 = arith.constant 0 : i32
    %c0_i32_0 = arith.constant 0 : i32
    %c0_i32_1 = arith.constant 0 : i32
    return %arg0, %c0_i32, %c0_i32_0 : i32, i32, i32
  }
  func.func @transform_3(%arg0: i32, %arg1: i32) -> (i32, i32, i32) {
    %c0_i32 = arith.constant 0 : i32
    %c0_i32_0 = arith.constant 0 : i32
    return %arg0, %arg1, %c0_i32 : i32, i32, i32
  }
  func.func @transform_4(%arg0: i32, %arg1: i32) -> (i32, i32) {
    %c0_i32 = arith.constant 0 : i32
    %c0_i32_0 = arith.constant 0 : i32
    %c0_i32_1 = arith.constant 0 : i32
    return %c0_i32, %c0_i32_0 : i32, i32
  }
  func.func @transform_5(%arg0: i32, %arg1: i32) -> (i32, i32) {
    %c0_i32 = arith.constant 0 : i32
    %c0_i32_0 = arith.constant 0 : i32
    %c0_i32_1 = arith.constant 0 : i32
    return %c0_i32, %c0_i32_0 : i32, i32
  }
  func.func @transform_6(%arg0: i32, %arg1: i32) -> (i32, i32) {
    %c0_i32 = arith.constant 0 : i32
    %c0_i32_0 = arith.constant 0 : i32
    %c0_i32_1 = arith.constant 0 : i32
    return %c0_i32, %c0_i32_0 : i32, i32
  }
  func.func @transform_7(%arg0: i32, %arg1: i32) -> (i32, i32) {
    %c0_i32 = arith.constant 0 : i32
    %c0_i32_0 = arith.constant 0 : i32
    %c0_i32_1 = arith.constant 0 : i32
    return %c0_i32, %c0_i32_0 : i32, i32
  }
  func.func @transform_8(%arg0: i32, %arg1: i32) -> (i32, i32) {
    %c0_i32 = arith.constant 0 : i32
    %c0_i32_0 = arith.constant 0 : i32
    %c0_i32_1 = arith.constant 0 : i32
    return %c0_i32, %c0_i32_0 : i32, i32
  }
  func.func @transform_9(%arg0: i32, %arg1: i32) -> (i32, i32) {
    %c0_i32 = arith.constant 0 : i32
    %c0_i32_0 = arith.constant 0 : i32
    %c0_i32_1 = arith.constant 0 : i32
    return %c0_i32, %c0_i32_0 : i32, i32
  }
  func.func @transform_10(%arg0: i32, %arg1: i32) -> (i32, i32) {
    %c0_i32 = arith.constant 0 : i32
    %c0_i32_0 = arith.constant 0 : i32
    %c0_i32_1 = arith.constant 0 : i32
    return %c0_i32, %c0_i32_0 : i32, i32
  }
  func.func @transform_11(%arg0: i32, %arg1: i32) -> (i32, i32) {
    %c0_i32 = arith.constant 0 : i32
    %c0_i32_0 = arith.constant 0 : i32
    %c0_i32_1 = arith.constant 0 : i32
    return %c0_i32, %c0_i32_0 : i32, i32
  }
  func.func @transform_12(%arg0: i32, %arg1: i32) -> (i32, i32, i32) {
    %c0_i32 = arith.constant 0 : i32
    %c0_i32_0 = arith.constant 0 : i32
    return %arg0, %arg1, %c0_i32 : i32, i32, i32
  }
}

</mosaic_0001>

<llo_original>
// kernel: tpu_custom_call.1
$region0: #{tpu_custom_call.1}
  #allocation0 [shape = 'u32[]', space=smem, size = 0x4, offset = 0x4, fixed_abs, tag = 'smem constant byte address 0x4 - core index']
  #allocation1 [shape = 'u32[144,128]{1,0:T(1,128)}', space=vmem, size = 0x12000, scoped, tag = 'internal scratch']
  #allocation2 [shape = 'bf16[8,32]{1,0:T(8,128)(2,1)}', space=vmem, size = 0x800, scoped, tag = 'scratch operand']
  %s0 = inlined_call_operand.hbm [shape: bf16[2,8,32], index: 0, kind: input, shape index: {}]
  %s1 = inlined_call_operand.hbm [shape: bf16[2,8,32], index: 1, kind: input, shape index: {}]
  %s2 = inlined_call_operand.hbm [shape: f32[2,1,8], index: 2, kind: input, shape index: {}]
  %s3 = inlined_call_operand.vmem [shape: f32[2,8,1], index: 3, kind: input, shape index: {}]
  %s4 = inlined_call_operand.vmem [shape: bf16[32,32], index: 4, kind: input, shape index: {}]
  %s5 = inlined_call_operand.hbm [shape: f32[1,32], index: 5, kind: input, shape index: {}]
  %s6 = inlined_call_operand.vmem [shape: bf16[32,64], index: 6, kind: input, shape index: {}]
  %s7 = inlined_call_operand.hbm [shape: f32[1,64], index: 7, kind: input, shape index: {}]
  %s8 = inlined_call_operand.vmem [shape: bf16[32,32], index: 8, kind: input, shape index: {}]
  %s9 = inlined_call_operand.vmem [shape: f32[1,32], index: 9, kind: input, shape index: {}]
  %s10 = inlined_call_operand.vmem [shape: f32[1,32], index: 10, kind: input, shape index: {}]
  %s11 = inlined_call_operand.vmem [shape: f32[1,32], index: 11, kind: input, shape index: {}]
  %s12 = inlined_call_operand.hbm [shape: bf16[2,8,32], index: 12, kind: output, shape index: {}]
  %s13 = sld [smem:[#allocation0]]
  $region101: #{tpu_custom_call.1} parent=0
    _
  %s15 = ssub.s32 1, %s13
  %s16 = scalar_select 0, %s15, %s13
  $region1: #{tpu_custom_call.1} parent=0
    #allocation3 [shape = 'u8[4096]{0}', space=vmem, size = 0x1000, scoped, tag = 'input window, operand 0']
    #allocation4 [shape = 's32[2]{0}', space=sflag, size = 0x8, scoped, tag = 'scoped memory for tpu_custom_call.1']
    #allocation5 [shape = 's32[2]{0}', space=sflag, size = 0x8, scoped, tag = 'scoped memory for tpu_custom_call.1']
    #allocation6 [shape = 'u8[4096]{0}', space=vmem, size = 0x1000, scoped, tag = 'input window, operand 1']
    #allocation7 [shape = 's32[2]{0}', space=sflag, size = 0x8, scoped, tag = 'scoped memory for tpu_custom_call.1']
    #allocation8 [shape = 'u8[1024]{0}', space=vmem, size = 0x400, scoped, tag = 'input window, operand 2']
    #allocation9 [shape = 'u8[512]{0}', space=vmem, size = 0x400, scoped, tag = 'input window, operand 5, single buffered']
    #allocation10 [shape = 's32[1]{0}', space=sflag, size = 0x4, scoped, tag = 'scoped memory for tpu_custom_call.1']
    #allocation11 [shape = 'u8[512]{0}', space=vmem, size = 0x400, scoped, tag = 'input window, operand 7, single buffered']
    #allocation12 [shape = 'u8[4096]{0}', space=vmem, size = 0x1000, scoped, tag = 'output window, operand 0']
    %17 = vsyncpa [#allocation4], 0
    %s18 = scalar_lea.sflag [#allocation4], 1
    %19 = vsyncpa %s18, 0
    %20 = vsyncpa [#allocation7], 0
    %s21 = scalar_lea.sflag [#allocation7], 1
    %22 = vsyncpa %s21, 0
    %23 = vsyncpa [#allocation10], 0
    %24 = vsyncpa [#allocation5], 0
    %s25 = scalar_lea.sflag [#allocation5], 1
    %26 = vsyncpa %s25, 0
    loop: start=0, step=1, limit=4
    $region2: #{tpu_custom_call.1} parent=1 // loop_pre_header
      _
    $region3: #{tpu_custom_call.1} parent=1 // loop_header
      %s28 = sphi 0, %s32
      %p29 = scmp.ge.s32.totalorder %s28, 4
      %s35 = sphi 0, %s47
      %s36 = sphi 0, %s43
      %s37 = sphi 0, %s35
      %s38 = sphi 0, %s36
      %s39 = sphi 0, %s37
      %s40 = sphi 0, %s38
      %s52 = sphi 0, %s54
      %s55 = sphi 0, %s52
      %s56 = sphi 0, %s55
      %s72 = sphi 0, %s56
      %s78 = sphi 0, %s80
      %s81 = sphi 0, %s78
      %s82 = sphi 0, %s81
      %s98 = sphi 0, %s82
      %s104 = sphi 0, %s106
      %s107 = sphi 0, %s104
      %s108 = sphi 0, %s107
      %s124 = sphi 0, %s108
      %s132 = sphi 0, %s134
      %s135 = sphi 0, %s132
      %s136 = sphi 0, %s135
      %s152 = sphi 0, %s136
      %s156 = sphi 0, %s156
      %s158 = sphi 0, %s156
      %s159 = sphi 0, %s158
      %s173 = sphi 0, %s159
      %s177 = sphi 0, %s177
      %s179 = sphi 0, %s177
      %s180 = sphi 0, %s179
      %s194 = sphi 0, %s180
      %s198 = sphi 0, %s198
      %s200 = sphi 0, %s198
      %s201 = sphi 0, %s200
      %s215 = sphi 0, %s201
      %s219 = sphi 0, %s219
      %s221 = sphi 0, %s219
      %s222 = sphi 0, %s221
      %s236 = sphi 0, %s222
      %s240 = sphi 0, %s240
      %s242 = sphi 0, %s240
      %s243 = sphi 0, %s242
      %s257 = sphi 0, %s243
      %s261 = sphi 0, %s261
      %s263 = sphi 0, %s261
      %s264 = sphi 0, %s263
      %s278 = sphi 0, %s264
      %s282 = sphi 0, %s282
      %s284 = sphi 0, %s282
      %s285 = sphi 0, %s284
      %s299 = sphi 0, %s285
      %s303 = sphi 0, %s303
      %s305 = sphi 0, %s303
      %s306 = sphi 0, %s305
      %s320 = sphi 0, %s306
      %s328 = sphi 0, %s330
      %s331 = sphi 0, %s328
      %s332 = sphi 0, %s331
      %s348 = sphi 0, %s332
    $region4: #{tpu_custom_call.1} parent=1 // loop_header_branch
      %31 = sbr.rel (%p29) target = $region8
    $region5: #{tpu_custom_call.1} parent=1 // loop_body
      %s33 = ssub.s32 %s28, 1
      %s34 = ssub.s32 %s28, 2
      %s41 = sadd.s32 1, %s36
      %p42 = scmp.ge.s32.totalorder %s41, 1
      %s43 = scalar_select %p42, 0, %s41
      %s44 = sadd.s32 1, %s35
      %s45 = scalar_select %p42, %s44, %s35
      %p46 = scmp.ge.s32.totalorder %s45, 2
      %s47 = scalar_select %p46, 0, %s45
      %s48 = ssub.s32 %s35, %s47
      %s49 = ssub.s32 %s36, %s43
      %s50 = sor.u32 %s48, %s49
      %p51 = scmp.eq.s32.totalorder %s50, 0
      %s53 = sadd.s32 %s52, 1
      %s54 = scalar_select %p51, %s52, %s53
      %p57 = pneg %p51
      %p58 = scmp.eq.s32.totalorder %s28, 1
      %p59 = por %p57, %p58
      %p60 = scmp.ne.s32.totalorder %s52, %s55
      %p61 = scmp.eq.s32.totalorder %s28, 0
      %p62 = por %p60, %p61
      %p63 = scmp.ne.s32.totalorder %s52, %s55
      %p64 = scmp.eq.s32.totalorder %s33, 1
      %p65 = por %p63, %p64
      %p66 = scmp.ne.s32.totalorder %s55, %s56
      %p67 = scmp.eq.s32.totalorder %s33, 0
      %p68 = por %p66, %p67
      %p69 = scmp.ne.s32.totalorder %s55, %s56
      %p70 = scmp.eq.s32.totalorder %s34, 1
      %p71 = por %p69, %p70
      %p73 = scmp.ne.s32.totalorder %s56, %s72
      %p74 = scmp.eq.s32.totalorder %s34, 0
      %p75 = por %p73, %p74
      %s76 = ssub.s32 %s35, %s47
      %p77 = scmp.eq.s32.totalorder %s76, 0
      %s79 = sadd.s32 %s78, 1
      %s80 = scalar_select %p77, %s78, %s79
      %p83 = pneg %p77
      %p84 = scmp.eq.s32.totalorder %s28, 1
      %p85 = por %p83, %p84
      %p86 = scmp.ne.s32.totalorder %s78, %s81
      %p87 = scmp.eq.s32.totalorder %s28, 0
      %p88 = por %p86, %p87
      %p89 = scmp.ne.s32.totalorder %s78, %s81
      %p90 = scmp.eq.s32.totalorder %s33, 1
      %p91 = por %p89, %p90
      %p92 = scmp.ne.s32.totalorder %s81, %s82
      %p93 = scmp.eq.s32.totalorder %s33, 0
      %p94 = por %p92, %p93
      %p95 = scmp.ne.s32.totalorder %s81, %s82
      %p96 = scmp.eq.s32.totalorder %s34, 1
      %p97 = por %p95, %p96
      %p99 = scmp.ne.s32.totalorder %s82, %s98
      %p100 = scmp.eq.s32.totalorder %s34, 0
      %p101 = por %p99, %p100
      %s102 = ssub.s32 %s35, %s47
      %p103 = scmp.eq.s32.totalorder %s102, 0
      %s105 = sadd.s32 %s104, 1
      %s106 = scalar_select %p103, %s104, %s105
      %p109 = pneg %p103
      %p110 = scmp.eq.s32.totalorder %s28, 1
      %p111 = por %p109, %p110
      %p112 = scmp.ne.s32.totalorder %s104, %s107
      %p113 = scmp.eq.s32.totalorder %s28, 0
      %p114 = por %p112, %p113
      %p115 = scmp.ne.s32.totalorder %s104, %s107
      %p116 = scmp.eq.s32.totalorder %s33, 1
      %p117 = por %p115, %p116
      %p118 = scmp.ne.s32.totalorder %s107, %s108
      %p119 = scmp.eq.s32.totalorder %s33, 0
      %p120 = por %p118, %p119
      %p121 = scmp.ne.s32.totalorder %s107, %s108
      %p122 = scmp.eq.s32.totalorder %s34, 1
      %p123 = por %p121, %p122
      %p125 = scmp.ne.s32.totalorder %s108, %s124
      %p126 = scmp.eq.s32.totalorder %s34, 0
      %p127 = por %p125, %p126
      %s128 = ssub.s32 %s35, %s47
      %s129 = ssub.s32 %s36, %s43
      %s130 = sor.u32 %s128, %s129
      %p131 = scmp.eq.s32.totalorder %s130, 0
      %s133 = sadd.s32 %s132, 1
      %s134 = scalar_select %p131, %s132, %s133
      %p137 = pneg %p131
      %p138 = scmp.eq.s32.totalorder %s28, 1
      %p139 = por %p137, %p138
      %p140 = scmp.ne.s32.totalorder %s132, %s135
      %p141 = scmp.eq.s32.totalorder %s28, 0
      %p142 = por %p140, %p141
      %p143 = scmp.ne.s32.totalorder %s132, %s135
      %p144 = scmp.eq.s32.totalorder %s33, 1
      %p145 = por %p143, %p144
      %p146 = scmp.ne.s32.totalorder %s135, %s136
      %p147 = scmp.eq.s32.totalorder %s33, 0
      %p148 = por %p146, %p147
      %p149 = scmp.ne.s32.totalorder %s135, %s136
      %p150 = scmp.eq.s32.totalorder %s34, 1
      %p151 = por %p149, %p150
      %p153 = scmp.ne.s32.totalorder %s136, %s152
      %p154 = scmp.eq.s32.totalorder %s34, 0
      %p155 = por %p153, %p154
      %s157 = sadd.s32 %s156, 1
      %p160 = scmp.eq.s32.totalorder %s28, 1
      %p161 = scmp.ne.s32.totalorder %s156, %s158
      %p162 = scmp.eq.s32.totalorder %s28, 0
      %p163 = por %p161, %p162
      %p164 = scmp.ne.s32.totalorder %s156, %s158
      %p165 = scmp.eq.s32.totalorder %s33, 1
      %p166 = por %p164, %p165
      %p167 = scmp.ne.s32.totalorder %s158, %s159
      %p168 = scmp.eq.s32.totalorder %s33, 0
      %p169 = por %p167, %p168
      %p170 = scmp.ne.s32.totalorder %s158, %s159
      %p171 = scmp.eq.s32.totalorder %s34, 1
      %p172 = por %p170, %p171
      %p174 = scmp.ne.s32.totalorder %s159, %s173
      %p175 = scmp.eq.s32.totalorder %s34, 0
      %p176 = por %p174, %p175
      %s178 = sadd.s32 %s177, 1
      %p181 = scmp.eq.s32.totalorder %s28, 1
      %p182 = scmp.ne.s32.totalorder %s177, %s179
      %p183 = scmp.eq.s32.totalorder %s28, 0
      %p184 = por %p182, %p183
      %p185 = scmp.ne.s32.totalorder %s177, %s179
      %p186 = scmp.eq.s32.totalorder %s33, 1
      %p187 = por %p185, %p186
      %p188 = scmp.ne.s32.totalorder %s179, %s180
      %p189 = scmp.eq.s32.totalorder %s33, 0
      %p190 = por %p188, %p189
      %p191 = scmp.ne.s32.totalorder %s179, %s180
      %p192 = scmp.eq.s32.totalorder %s34, 1
      %p193 = por %p191, %p192
      %p195 = scmp.ne.s32.totalorder %s180, %s194
      %p196 = scmp.eq.s32.totalorder %s34, 0
      %p197 = por %p195, %p196
      %s199 = sadd.s32 %s198, 1
      %p202 = scmp.eq.s32.totalorder %s28, 1
      %p203 = scmp.ne.s32.totalorder %s198, %s200
      %p204 = scmp.eq.s32.totalorder %s28, 0
      %p205 = por %p203, %p204
      %p206 = scmp.ne.s32.totalorder %s198, %s200
      %p207 = scmp.eq.s32.totalorder %s33, 1
      %p208 = por %p206, %p207
      %p209 = scmp.ne.s32.totalorder %s200, %s201
      %p210 = scmp.eq.s32.totalorder %s33, 0
      %p211 = por %p209, %p210
      %p212 = scmp.ne.s32.totalorder %s200, %s201
      %p213 = scmp.eq.s32.totalorder %s34, 1
      %p214 = por %p212, %p213
      %p216 = scmp.ne.s32.totalorder %s201, %s215
      %p217 = scmp.eq.s32.totalorder %s34, 0
      %p218 = por %p216, %p217
      %s220 = sadd.s32 %s219, 1
      %p223 = scmp.eq.s32.totalorder %s28, 1
      %p224 = scmp.ne.s32.totalorder %s219, %s221
      %p225 = scmp.eq.s32.totalorder %s28, 0
      %p226 = por %p224, %p225
      %p227 = scmp.ne.s32.totalorder %s219, %s221
      %p228 = scmp.eq.s32.totalorder %s33, 1
      %p229 = por %p227, %p228
      %p230 = scmp.ne.s32.totalorder %s221, %s222
      %p231 = scmp.eq.s32.totalorder %s33, 0
      %p232 = por %p230, %p231
      %p233 = scmp.ne.s32.totalorder %s221, %s222
      %p234 = scmp.eq.s32.totalorder %s34, 1
      %p235 = por %p233, %p234
      %p237 = scmp.ne.s32.totalorder %s222, %s236
      %p238 = scmp.eq.s32.totalorder %s34, 0
      %p239 = por %p237, %p238
      %s241 = sadd.s32 %s240, 1
      %p244 = scmp.eq.s32.totalorder %s28, 1
      %p245 = scmp.ne.s32.totalorder %s240, %s242
      %p246 = scmp.eq.s32.totalorder %s28, 0
      %p247 = por %p245, %p246
      %p248 = scmp.ne.s32.totalorder %s240, %s242
      %p249 = scmp.eq.s32.totalorder %s33, 1
      %p250 = por %p248, %p249
      %p251 = scmp.ne.s32.totalorder %s242, %s243
      %p252 = scmp.eq.s32.totalorder %s33, 0
      %p253 = por %p251, %p252
      %p254 = scmp.ne.s32.totalorder %s242, %s243
      %p255 = scmp.eq.s32.totalorder %s34, 1
      %p256 = por %p254, %p255
      %p258 = scmp.ne.s32.totalorder %s243, %s257
      %p259 = scmp.eq.s32.totalorder %s34, 0
      %p260 = por %p258, %p259
      %s262 = sadd.s32 %s261, 1
      %p265 = scmp.eq.s32.totalorder %s28, 1
      %p266 = scmp.ne.s32.totalorder %s261, %s263
      %p267 = scmp.eq.s32.totalorder %s28, 0
      %p268 = por %p266, %p267
      %p269 = scmp.ne.s32.totalorder %s261, %s263
      %p270 = scmp.eq.s32.totalorder %s33, 1
      %p271 = por %p269, %p270
      %p272 = scmp.ne.s32.totalorder %s263, %s264
      %p273 = scmp.eq.s32.totalorder %s33, 0
      %p274 = por %p272, %p273
      %p275 = scmp.ne.s32.totalorder %s263, %s264
      %p276 = scmp.eq.s32.totalorder %s34, 1
      %p277 = por %p275, %p276
      %p279 = scmp.ne.s32.totalorder %s264, %s278
      %p280 = scmp.eq.s32.totalorder %s34, 0
      %p281 = por %p279, %p280
      %s283 = sadd.s32 %s282, 1
      %p286 = scmp.eq.s32.totalorder %s28, 1
      %p287 = scmp.ne.s32.totalorder %s282, %s284
      %p288 = scmp.eq.s32.totalorder %s28, 0
      %p289 = por %p287, %p288
      %p290 = scmp.ne.s32.totalorder %s282, %s284
      %p291 = scmp.eq.s32.totalorder %s33, 1
      %p292 = por %p290, %p291
      %p293 = scmp.ne.s32.totalorder %s284, %s285
      %p294 = scmp.eq.s32.totalorder %s33, 0
      %p295 = por %p293, %p294
      %p296 = scmp.ne.s32.totalorder %s284, %s285
      %p297 = scmp.eq.s32.totalorder %s34, 1
      %p298 = por %p296, %p297
      %p300 = scmp.ne.s32.totalorder %s285, %s299
      %p301 = scmp.eq.s32.totalorder %s34, 0
      %p302 = por %p300, %p301
      %s304 = sadd.s32 %s303, 1
      %p307 = scmp.eq.s32.totalorder %s28, 1
      %p308 = scmp.ne.s32.totalorder %s303, %s305
      %p309 = scmp.eq.s32.totalorder %s28, 0
      %p310 = por %p308, %p309
      %p311 = scmp.ne.s32.totalorder %s303, %s305
      %p312 = scmp.eq.s32.totalorder %s33, 1
      %p313 = por %p311, %p312
      %p314 = scmp.ne.s32.totalorder %s305, %s306
      %p315 = scmp.eq.s32.totalorder %s33, 0
      %p316 = por %p314, %p315
      %p317 = scmp.ne.s32.totalorder %s305, %s306
      %p318 = scmp.eq.s32.totalorder %s34, 1
      %p319 = por %p317, %p318
      %p321 = scmp.ne.s32.totalorder %s306, %s320
      %p322 = scmp.eq.s32.totalorder %s34, 0
      %p323 = por %p321, %p322
      %s324 = ssub.s32 %s35, %s47
      %s325 = ssub.s32 %s36, %s43
      %s326 = sor.u32 %s324, %s325
      %p327 = scmp.eq.s32.totalorder %s326, 0
      %s329 = sadd.s32 %s328, 1
      %s330 = scalar_select %p327, %s328, %s329
      %p333 = pneg %p327
      %p334 = scmp.eq.s32.totalorder %s28, 1
      %p335 = por %p333, %p334
      %p336 = scmp.ne.s32.totalorder %s328, %s331
      %p337 = scmp.eq.s32.totalorder %s28, 0
      %p338 = por %p336, %p337
      %p339 = scmp.ne.s32.totalorder %s328, %s331
      %p340 = scmp.eq.s32.totalorder %s33, 1
      %p341 = por %p339, %p340
      %p342 = scmp.ne.s32.totalorder %s331, %s332
      %p343 = scmp.eq.s32.totalorder %s33, 0
      %p344 = por %p342, %p343
      %p345 = scmp.ne.s32.totalorder %s331, %s332
      %p346 = scmp.eq.s32.totalorder %s34, 1
      %p347 = por %p345, %p346
      %p349 = scmp.ne.s32.totalorder %s332, %s348
      %p350 = scmp.eq.s32.totalorder %s34, 0
      %p351 = por %p349, %p350
      %p352 = scmp.le.s32.totalorder 1, %s28
      %p353 = scmp.lt.s32.totalorder %s28, 3
      %p354 = pnand %p352, %p353
      %p355 = pneg %p354
      // Predicated region
      $region9: #{tpu_custom_call.1} parent=5 // pred_check
        _
      $region10: #{tpu_custom_call.1} parent=5 // pred_check_branch
        %357 = sbr.rel (%p354) target = $region12
      $region11: #{tpu_custom_call.1} parent=5 // pred_region
        %s358 = ssub.s32 %s28, 1
        // Predicated region
        $region13: #{tpu_custom_call.1} parent=11 // pred_check
          %p359 = pneg %p169
        $region14: #{tpu_custom_call.1} parent=11 // pred_check_branch
          %361 = sbr.rel (%p359) target = $region16
        $region15: #{tpu_custom_call.1} parent=11 // pred_region
          _
        $region16: #{tpu_custom_call.1} parent=11 // pred_fallthru
          _
        // Predicated region
        $region17: #{tpu_custom_call.1} parent=11 // pred_check
          %p362 = pneg %p190
        $region18: #{tpu_custom_call.1} parent=11 // pred_check_branch
          %364 = sbr.rel (%p362) target = $region20
        $region19: #{tpu_custom_call.1} parent=11 // pred_region
          %s366 = ssub.s32 16, 16
          %367 = vsyncadd [#allocation10], %s366
          %s369 = sshll.u32 [#allocation9], 4
          %s370 = int_to_ptr.vmem [resolvable:$true] %s369
          %372 = dma.hbm_to_vmem [thread:$0]  %s5, 16, %s370, [#allocation10]
        $region20: #{tpu_custom_call.1} parent=11 // pred_fallthru
          _
        // Predicated region
        $region21: #{tpu_custom_call.1} parent=11 // pred_check
          %p373 = pneg %p211
        $region22: #{tpu_custom_call.1} parent=11 // pred_check_branch
          %375 = sbr.rel (%p373) target = $region24
        $region23: #{tpu_custom_call.1} parent=11 // pred_region
          _
        $region24: #{tpu_custom_call.1} parent=11 // pred_fallthru
          _
        // Predicated region
        $region25: #{tpu_custom_call.1} parent=11 // pred_check
          %p376 = pneg %p232
        $region26: #{tpu_custom_call.1} parent=11 // pred_check_branch
          %378 = sbr.rel (%p376) target = $region28
        $region27: #{tpu_custom_call.1} parent=11 // pred_region
          %s380 = ssub.s32 16, 16
          %381 = vsyncadd [#allocation10], %s380
          %s383 = sshll.u32 [#allocation11], 4
          %s384 = int_to_ptr.vmem [resolvable:$true] %s383
          %386 = dma.hbm_to_vmem [thread:$0]  %s7, 16, %s384, [#allocation10]
        $region28: #{tpu_custom_call.1} parent=11 // pred_fallthru
          _
        // Predicated region
        $region29: #{tpu_custom_call.1} parent=11 // pred_check
          %p387 = pneg %p253
        $region30: #{tpu_custom_call.1} parent=11 // pred_check_branch
          %389 = sbr.rel (%p387) target = $region32
        $region31: #{tpu_custom_call.1} parent=11 // pred_region
          _
        $region32: #{tpu_custom_call.1} parent=11 // pred_fallthru
          _
        // Predicated region
        $region33: #{tpu_custom_call.1} parent=11 // pred_check
          %p390 = pneg %p274
        $region34: #{tpu_custom_call.1} parent=11 // pred_check_branch
          %392 = sbr.rel (%p390) target = $region36
        $region35: #{tpu_custom_call.1} parent=11 // pred_region
          _
        $region36: #{tpu_custom_call.1} parent=11 // pred_fallthru
          _
        // Predicated region
        $region37: #{tpu_custom_call.1} parent=11 // pred_check
          %p393 = pneg %p295
        $region38: #{tpu_custom_call.1} parent=11 // pred_check_branch
          %395 = sbr.rel (%p393) target = $region40
        $region39: #{tpu_custom_call.1} parent=11 // pred_region
          _
        $region40: #{tpu_custom_call.1} parent=11 // pred_fallthru
          _
        // Predicated region
        $region41: #{tpu_custom_call.1} parent=11 // pred_check
          %p396 = pneg %p316
        $region42: #{tpu_custom_call.1} parent=11 // pred_check_branch
          %398 = sbr.rel (%p396) target = $region44
        $region43: #{tpu_custom_call.1} parent=11 // pred_region
          _
        $region44: #{tpu_custom_call.1} parent=11 // pred_fallthru
          _
      $region12: #{tpu_custom_call.1} parent=5 // pred_fallthru
        _
      %p399 = scmp.lt.s32.totalorder %s28, 2
      // Predicated region
      $region45: #{tpu_custom_call.1} parent=5 // pred_check
        %p400 = pneg %p399
      $region46: #{tpu_custom_call.1} parent=5 // pred_check_branch
        %402 = sbr.rel (%p400) target = $region48
      $region47: #{tpu_custom_call.1} parent=5 // pred_region
        // Predicated region
        $region49: #{tpu_custom_call.1} parent=47 // pred_check
          %p403 = pneg %p62
        $region50: #{tpu_custom_call.1} parent=47 // pred_check_branch
          %405 = sbr.rel (%p403) target = $region52
        $region51: #{tpu_custom_call.1} parent=47 // pred_region
          %s406 = sand.u32 %s52, 1
          %s407 = scalar_lea.sflag [#allocation4], %s406
          %s408 = sand.u32 %s52, 1
          %s409 = smul.addr %s408, 4
          %s410 = scalar_lea.vmem [#allocation3], %s409
          %s412 = ssub.s32 64, 64
          %413 = vsyncadd %s407, %s412
          %s414 = sadd.s32 %s36, %s35
          %s415 = smul.addr %s414, 64
          %s416 = scalar_lea.hbm %s0, %s415
          %s418 = sshll.u32 %s410, 4
          %s419 = int_to_ptr.vmem [resolvable:$true] %s418
          %421 = dma.hbm_to_vmem [thread:$0]  %s416, 64, %s419, %s407
        $region52: #{tpu_custom_call.1} parent=47 // pred_fallthru
          _
        // Predicated region
        $region53: #{tpu_custom_call.1} parent=47 // pred_check
          %p422 = pneg %p88
        $region54: #{tpu_custom_call.1} parent=47 // pred_check_branch
          %424 = sbr.rel (%p422) target = $region56
        $region55: #{tpu_custom_call.1} parent=47 // pred_region
          %s425 = sand.u32 %s28, 1
          %s426 = scalar_lea.sflag [#allocation7], %s425
          %s427 = sand.u32 %s78, 1
          %s428 = smul.addr %s427, 4
          %s429 = scalar_lea.vmem [#allocation6], %s428
          %s431 = ssub.s32 64, 64
          %432 = vsyncadd %s426, %s431
          %s433 = smul.addr %s35, 64
          %s434 = scalar_lea.hbm %s1, %s433
          %s436 = sshll.u32 %s429, 4
          %s437 = int_to_ptr.vmem [resolvable:$true] %s436
          %439 = dma.hbm_to_vmem [thread:$0]  %s434, 64, %s437, %s426
        $region56: #{tpu_custom_call.1} parent=47 // pred_fallthru
          _
        // Predicated region
        $region57: #{tpu_custom_call.1} parent=47 // pred_check
          %p440 = pneg %p114
        $region58: #{tpu_custom_call.1} parent=47 // pred_check_branch
          %442 = sbr.rel (%p440) target = $region60
        $region59: #{tpu_custom_call.1} parent=47 // pred_region
          %s443 = sand.u32 %s28, 1
          %s444 = scalar_lea.sflag [#allocation7], %s443
          %s445 = sand.u32 %s104, 1
          %s446 = scalar_lea.vmem [#allocation8], %s445
          %s448 = ssub.s32 16, 16
          %449 = vsyncadd %s444, %s448
          %s450 = smul.addr %s35, 16
          %s451 = scalar_lea.hbm %s2, %s450
          %s453 = sshll.u32 %s446, 4
          %s454 = int_to_ptr.vmem [resolvable:$true] %s453
          %456 = dma.hbm_to_vmem [thread:$0]  %s451, 16, %s454, %s444
        $region60: #{tpu_custom_call.1} parent=47 // pred_fallthru
          _
        // Predicated region
        $region61: #{tpu_custom_call.1} parent=47 // pred_check
          %p457 = pneg %p142
        $region62: #{tpu_custom_call.1} parent=47 // pred_check_branch
          %459 = sbr.rel (%p457) target = $region64
        $region63: #{tpu_custom_call.1} parent=47 // pred_region
          %p460 = scmp.lt.s32.totalorder %s35, 1
          %s461 = scalar_select %p460, %s35, 1
          %p462 = scmp.lt.s32.totalorder %s36, 0
          %s463 = scalar_select %p462, %s36, 0
          %s464 = sadd.s32 %s463, %s461
          %s465 = smul.addr %s464, 8
          %s466 = scalar_lea.vmem %s3, %s465
        $region64: #{tpu_custom_call.1} parent=47 // pred_fallthru
          _
      $region48: #{tpu_custom_call.1} parent=5 // pred_fallthru
        _
      %p467 = scmp.le.s32.totalorder 1, %s28
      %p468 = scmp.lt.s32.totalorder %s28, 3
      %p469 = pnand %p467, %p468
      %p470 = pneg %p469
      // Predicated region
      $region65: #{tpu_custom_call.1} parent=5 // pred_check
        _
      $region66: #{tpu_custom_call.1} parent=5 // pred_check_branch
        %472 = sbr.rel (%p469) target = $region68
      $region67: #{tpu_custom_call.1} parent=5 // pred_region
        %s473 = ssub.s32 %s28, 1
        %s474 = sand.u32 %s55, 1
        %s475 = scalar_lea.sflag [#allocation4], %s474
        %s476 = sand.u32 %s55, 1
        %s477 = smul.addr %s476, 4
        %s478 = scalar_lea.vmem [#allocation3], %s477
        // Predicated region
        $region69: #{tpu_custom_call.1} parent=67 // pred_check
          %p479 = pneg %p68
        $region70: #{tpu_custom_call.1} parent=67 // pred_check_branch
          %481 = sbr.rel (%p479) target = $region72
        $region71: #{tpu_custom_call.1} parent=67 // pred_region
          %482 = dma.done %s475, 64
        $region72: #{tpu_custom_call.1} parent=67 // pred_fallthru
          _
        %s483 = sand.u32 %s33, 1
        %s484 = scalar_lea.sflag [#allocation7], %s483
        %s485 = sand.u32 %s81, 1
        %s486 = smul.addr %s485, 4
        %s487 = scalar_lea.vmem [#allocation6], %s486
        // Predicated region
        $region73: #{tpu_custom_call.1} parent=67 // pred_check
          %p488 = pneg %p94
        $region74: #{tpu_custom_call.1} parent=67 // pred_check_branch
          %490 = sbr.rel (%p488) target = $region76
        $region75: #{tpu_custom_call.1} parent=67 // pred_region
          %491 = dma.done %s484, 64
        $region76: #{tpu_custom_call.1} parent=67 // pred_fallthru
          _
        %s492 = sand.u32 %s33, 1
        %s493 = scalar_lea.sflag [#allocation7], %s492
        %s494 = sand.u32 %s107, 1
        %s495 = scalar_lea.vmem [#allocation8], %s494
        // Predicated region
        $region77: #{tpu_custom_call.1} parent=67 // pred_check
          %p496 = pneg %p120
        $region78: #{tpu_custom_call.1} parent=67 // pred_check_branch
          %498 = sbr.rel (%p496) target = $region80
        $region79: #{tpu_custom_call.1} parent=67 // pred_region
          %499 = dma.done %s493, 16
        $region80: #{tpu_custom_call.1} parent=67 // pred_fallthru
          _
        // Predicated region
        $region81: #{tpu_custom_call.1} parent=67 // pred_check
          %p500 = pneg %p190
        $region82: #{tpu_custom_call.1} parent=67 // pred_check_branch
          %502 = sbr.rel (%p500) target = $region84
        $region83: #{tpu_custom_call.1} parent=67 // pred_region
          %503 = dma.done [#allocation10], 16
        $region84: #{tpu_custom_call.1} parent=67 // pred_fallthru
          _
        // Predicated region
        $region85: #{tpu_custom_call.1} parent=67 // pred_check
          %p504 = pneg %p232
        $region86: #{tpu_custom_call.1} parent=67 // pred_check_branch
          %506 = sbr.rel (%p504) target = $region88
        $region87: #{tpu_custom_call.1} parent=67 // pred_region
          %507 = dma.done [#allocation10], 16
        $region88: #{tpu_custom_call.1} parent=67 // pred_fallthru
          _
        %s508 = sand.u32 %s55, 1
        %s509 = scalar_lea.sflag [#allocation4], %s508
        %s510 = sand.u32 %s55, 1
        %s511 = smul.addr %s510, 4
        %s512 = scalar_lea.vmem [#allocation3], %s511
        %p513 = pneg %p68
        %p514 = pneg %p65
        %s515 = sand.u32 %s33, 1
        %s516 = scalar_lea.sflag [#allocation7], %s515
        %s517 = sand.u32 %s81, 1
        %s518 = smul.addr %s517, 4
        %s519 = scalar_lea.vmem [#allocation6], %s518
        %p520 = pneg %p94
        %p521 = pneg %p91
        %s522 = sand.u32 %s33, 1
        %s523 = scalar_lea.sflag [#allocation7], %s522
        %s524 = sand.u32 %s107, 1
        %s525 = scalar_lea.vmem [#allocation8], %s524
        %p526 = pneg %p120
        %p527 = pneg %p117
        %p528 = scmp.lt.s32.totalorder %s37, 1
        %s529 = scalar_select %p528, %s37, 1
        %p530 = scmp.lt.s32.totalorder %s38, 0
        %s531 = scalar_select %p530, %s38, 0
        %s532 = sadd.s32 %s531, %s529
        %s533 = smul.addr %s532, 8
        %s534 = scalar_lea.vmem %s3, %s533
        %p535 = pneg %p148
        %p536 = pneg %p145
        %p537 = pneg %p169
        %p538 = pneg %p166
        %p539 = pneg %p190
        %p540 = pneg %p187
        %p541 = pneg %p211
        %p542 = pneg %p208
        %p543 = pneg %p232
        %p544 = pneg %p229
        %p545 = pneg %p253
        %p546 = pneg %p250
        %p547 = pneg %p274
        %p548 = pneg %p271
        %p549 = pneg %p295
        %p550 = pneg %p292
        %p551 = pneg %p316
        %p552 = pneg %p313
        %p553 = pneg %p344
        %p554 = pneg %p341
        %s555 = sand.u32 %s331, 1
        %s556 = scalar_lea.sflag [#allocation5], %s555
        %s557 = sand.u32 %s331, 1
        %s558 = smul.addr %s557, 4
        %s559 = scalar_lea.vmem [#allocation12], %s558
        %p560 = scmp.lt.s32.totalorder %s37, 1
        %s561 = scalar_select %p560, %s37, 1
        %p562 = scmp.lt.s32.totalorder %s38, 0
        %s563 = scalar_select %p562, %s38, 0
        %s564 = sadd.s32 %s563, %s561
        %s565 = smul.addr %s564, 8
        %s566 = scalar_lea.vmem %s3, %s565
        %v568 = vld [vmem:[%s478] sm:$0xf]
        %v569 = vld [vmem:[%s487] sm:$0xf]
        %v570 = vld [vmem:[%s495] sm:$0x1]
        %vm571 = vcmp.gt.f32.partialorder %v570, 0.5
        %v572 = vsel %vm571, -1e+09, 0.0
        %v573 = vld [vmem:[%s4] sm:$0xf]
        %v574 = vld [vmem:[%s4 + $0x4] sm:$0xf]
        %v575 = vld [vmem:[%s4 + $0x8] sm:$0xf]
        %v576 = vld [vmem:[%s4 + $0xc] sm:$0xf]
        %v577 = vld [vmem:[#allocation9] sm:$0x1]
        %v579 = vlaneseq
        %v580 = vshrl.u32 %v579, 7
        %v581 = vsub.s32 0, %v580
        %v582 = vrot.slane %v577, %v581
        %v588 = vunpack.c.l.b16 %v573
        %v589 = vunpack.c.l.b16 %v574
        %v590 = vunpack.c.l.b16 %v575
        %v591 = vunpack.c.l.b16 %v576
        %v592 = vpack.c.b16 %v589, %v588
        %v593 = vpack.c.b16 %v591, %v590
        %vm596 = vcmask 261120
        %v598 = vsel %vm596, %v568, 0
        %600 = vmatprep.subr.bf16.mxu0 0
        %601 = vmatpush1.bf16.msra.mxu0 %v592
        %602 = vmatprep.subr.bf16.mxu0 0
        %603 = vmatpush1.bf16.msra.mxu0 %v593
        %604 = vmatprep.subr.bf16.mxu0 0
        %605 = vmatpush1.bf16.msra.mxu0 0
        %606 = vmatprep.subr.bf16.mxu0 0
        %607 = vmatpush1.bf16.msra.mxu0 0
        %608 = vmatprep.subr.bf16.mxu0 0
        %609 = vmatpush1.bf16.msra.mxu0 0
        %610 = vmatprep.subr.bf16.mxu0 0
        %611 = vmatpush1.bf16.msra.mxu0 0
        %612 = vmatprep.subr.bf16.mxu0 0
        %613 = vmatpush1.bf16.msra.mxu0 0
        %614 = vmatprep.subr.bf16.mxu0 0
        %615 = vmatpush1.bf16.msra.mxu0 0
        %616 = vmatprep.subr.bf16.mxu0 0
        %617 = vmatpush1.bf16.msra.mxu0 0
        %618 = vmatprep.subr.bf16.mxu0 0
        %619 = vmatpush1.bf16.msra.mxu0 0
        %620 = vmatprep.subr.bf16.mxu0 0
        %621 = vmatpush1.bf16.msra.mxu0 0
        %622 = vmatprep.subr.bf16.mxu0 0
        %623 = vmatpush1.bf16.msra.mxu0 0
        %624 = vmatprep.subr.bf16.mxu0 0
        %625 = vmatpush1.bf16.msra.mxu0 0
        %626 = vmatprep.subr.bf16.mxu0 0
        %627 = vmatpush1.bf16.msra.mxu0 0
        %628 = vmatprep.subr.bf16.mxu0 0
        %629 = vmatpush1.bf16.msra.mxu0 0
        %630 = vmatprep.subr.bf16.mxu0 0
        %631 = vmatpush1.bf16.msra.mxu0 0
        %632 = vmatprep.mubr.bf16.mxu0 0
        %633 = vmatmul.mubr.bf16.gmra.mrb[0].mxu0 %v598
        %v634 = vpop.f32.mrb[0].mxu0
        %v635 = vadd.f32 %v582, %v634
        %v636 = vpop.f32.mrb[0].mxu0
        %v637 = vpop.f32.mrb[0].mxu0
        %v638 = vpop.f32.mrb[0].mxu0
        %639 = vdwg.mxu0
        %v640 = vpack.c.bf16 %v635, %v635
        %v641 = vld [vmem:[%s6] sm:$0xf]
        %v642 = vld [vmem:[%s6 + $0x4] sm:$0xf]
        %v643 = vld [vmem:[%s6 + $0x8] sm:$0xf]
        %v644 = vld [vmem:[%s6 + $0xc] sm:$0xf]
        %v645 = vld [vmem:[#allocation11] sm:$0x1]
        %v647 = vlaneseq
        %v648 = vshrl.u32 %v647, 7
        %v649 = vsub.s32 0, %v648
        %v650 = vrot.slane %v645, %v649
        %v656 = vunpack.c.l.b16 %v641
        %v657 = vunpack.c.l.b16 %v642
        %v658 = vunpack.c.l.b16 %v643
        %v659 = vunpack.c.l.b16 %v644
        %v660 = vpack.c.b16 %v657, %v656
        %v661 = vpack.c.b16 %v659, %v658
        %v665 = vsel %vm596, %v569, 0
        %667 = vmatprep.subr.bf16.mxu0 0
        %668 = vmatpush1.bf16.msra.mxu0 %v660
        %669 = vmatprep.subr.bf16.mxu0 0
        %670 = vmatpush1.bf16.msra.mxu0 %v661
        %671 = vmatprep.subr.bf16.mxu0 0
        %672 = vmatpush1.bf16.msra.mxu0 0
        %673 = vmatprep.subr.bf16.mxu0 0
        %674 = vmatpush1.bf16.msra.mxu0 0
        %675 = vmatprep.subr.bf16.mxu0 0
        %676 = vmatpush1.bf16.msra.mxu0 0
        %677 = vmatprep.subr.bf16.mxu0 0
        %678 = vmatpush1.bf16.msra.mxu0 0
        %679 = vmatprep.subr.bf16.mxu0 0
        %680 = vmatpush1.bf16.msra.mxu0 0
        %681 = vmatprep.subr.bf16.mxu0 0
        %682 = vmatpush1.bf16.msra.mxu0 0
        %683 = vmatprep.subr.bf16.mxu0 0
        %684 = vmatpush1.bf16.msra.mxu0 0
        %685 = vmatprep.subr.bf16.mxu0 0
        %686 = vmatpush1.bf16.msra.mxu0 0
        %687 = vmatprep.subr.bf16.mxu0 0
        %688 = vmatpush1.bf16.msra.mxu0 0
        %689 = vmatprep.subr.bf16.mxu0 0
        %690 = vmatpush1.bf16.msra.mxu0 0
        %691 = vmatprep.subr.bf16.mxu0 0
        %692 = vmatpush1.bf16.msra.mxu0 0
        %693 = vmatprep.subr.bf16.mxu0 0
        %694 = vmatpush1.bf16.msra.mxu0 0
        %695 = vmatprep.subr.bf16.mxu0 0
        %696 = vmatpush1.bf16.msra.mxu0 0
        %697 = vmatprep.subr.bf16.mxu0 0
        %698 = vmatpush1.bf16.msra.mxu0 0
        %699 = vmatprep.mubr.bf16.mxu0 0
        %700 = vmatmul.mubr.bf16.gmra.mrb[0].mxu0 %v665
        %v701 = vpop.f32.mrb[0].mxu0
        %v702 = vadd.f32 %v650, %v701
        %v703 = vpop.f32.mrb[0].mxu0
        %v704 = vpop.f32.mrb[0].mxu0
        %v705 = vpop.f32.mrb[0].mxu0
        %706 = vdwg.mxu0
        %v707 = vpack.c.bf16 %v702, %v702
        %vm708 = vcmask 130048
        %v710 = vsel %vm708, %v640, 0
        %v713 = vsel %vm708, %v707, 0
        %715 = vmatprep.subr.bf16.mxu0 0
        %716 = vmatpush1.bf16.xpose.msra.mxu0 %v713
        %717 = vmatprep.subr.bf16.mxu0 0
        %718 = vmatpush1.bf16.xpose.msra.mxu0 0
        %719 = vmatprep.subr.bf16.mxu0 0
        %720 = vmatpush1.bf16.xpose.msra.mxu0 0
        %721 = vmatprep.subr.bf16.mxu0 0
        %722 = vmatpush1.bf16.xpose.msra.mxu0 0
        %723 = vmatprep.subr.bf16.mxu0 0
        %724 = vmatpush1.bf16.xpose.msra.mxu0 0
        %725 = vmatprep.subr.bf16.mxu0 0
        %726 = vmatpush1.bf16.xpose.msra.mxu0 0
        %727 = vmatprep.subr.bf16.mxu0 0
        %728 = vmatpush1.bf16.xpose.msra.mxu0 0
        %729 = vmatprep.subr.bf16.mxu0 0
        %730 = vmatpush1.bf16.xpose.msra.mxu0 0
        %731 = vmatprep.subr.bf16.mxu0 0
        %732 = vmatpush1.bf16.xpose.msra.mxu0 0
        %733 = vmatprep.subr.bf16.mxu0 0
        %734 = vmatpush1.bf16.xpose.msra.mxu0 0
        %735 = vmatprep.subr.bf16.mxu0 0
        %736 = vmatpush1.bf16.xpose.msra.mxu0 0
        %737 = vmatprep.subr.bf16.mxu0 0
        %738 = vmatpush1.bf16.xpose.msra.mxu0 0
        %739 = vmatprep.subr.bf16.mxu0 0
        %740 = vmatpush1.bf16.xpose.msra.mxu0 0
        %741 = vmatprep.subr.bf16.mxu0 0
        %742 = vmatpush1.bf16.xpose.msra.mxu0 0
        %743 = vmatprep.subr.bf16.mxu0 0
        %744 = vmatpush1.bf16.xpose.msra.mxu0 0
        %745 = vmatprep.subr.bf16.mxu0 0
        %746 = vmatpush1.bf16.xpose.msra.mxu0 0
        %747 = vmatprep.mubr.bf16.mxu0 0
        %748 = vmatmul.mubr.bf16.gmra.mrb[0].mxu0 %v710
        %v749 = vpop.f32.mrb[0].mxu0
        %v750 = vadd.f32 0.0, %v749
        %v751 = vpop.f32.mrb[0].mxu0
        %v752 = vpop.f32.mrb[0].mxu0
        %v753 = vpop.f32.mrb[0].mxu0
        %754 = vdwg.mxu0
        %v755 = vmul.f32 %v750, 0.25
        %v757 = vlaneseq
        %v758 = vshrl.u32 %v757, 7
        %v759 = vsub.s32 0, %v758
        %v760 = vrot.slane %v572, %v759
        %v762 = vadd.f32 %v755, %v760
        %vm763 = vcmask 64512
        %v764 = vsel %vm763, %v762, -inf
        %765 = vmax.xlane.f32.xlu0 %v764
        %v766 = vpop.xlane.xlu0 %765
        %v767 = vsub.f32 %v762, %v766
        %v768 = vmul.f32 %v767, 1.442695
        %v769 = vpow.pop %v768
        %v770 = vsel %vm763, %v769, 0.0
        %771 = vadd.xlane.f32.xlu0 %v770
        %v772 = vpop.xlane.xlu0 %771
        %v773 = vrcp.pop %v772
        %v774 = vmul.f32 %v769, %v773
        %v775 = vpack.c.bf16 %v774, %v774
        %777 = vrot.lane.b32.xlu0 %v707, 96
        %v778 = vpop.permute.xlu0 %777
        %v780 = vsel %vm763, %v775, 0
        %vm782 = vcmask 1043456
        %v784 = vsel %vm782, %v778, 0
        %786 = vmatprep.subr.bf16.mxu0 0
        %787 = vmatpush1.bf16.msra.mxu0 %v784
        %788 = vmatprep.subr.bf16.mxu0 0
        %789 = vmatpush1.bf16.msra.mxu0 0
        %790 = vmatprep.subr.bf16.mxu0 0
        %791 = vmatpush1.bf16.msra.mxu0 0
        %792 = vmatprep.subr.bf16.mxu0 0
        %793 = vmatpush1.bf16.msra.mxu0 0
        %794 = vmatprep.subr.bf16.mxu0 0
        %795 = vmatpush1.bf16.msra.mxu0 0
        %796 = vmatprep.subr.bf16.mxu0 0
        %797 = vmatpush1.bf16.msra.mxu0 0
        %798 = vmatprep.subr.bf16.mxu0 0
        %799 = vmatpush1.bf16.msra.mxu0 0
        %800 = vmatprep.subr.bf16.mxu0 0
        %801 = vmatpush1.bf16.msra.mxu0 0
        %802 = vmatprep.subr.bf16.mxu0 0
        %803 = vmatpush1.bf16.msra.mxu0 0
        %804 = vmatprep.subr.bf16.mxu0 0
        %805 = vmatpush1.bf16.msra.mxu0 0
        %806 = vmatprep.subr.bf16.mxu0 0
        %807 = vmatpush1.bf16.msra.mxu0 0
        %808 = vmatprep.subr.bf16.mxu0 0
        %809 = vmatpush1.bf16.msra.mxu0 0
        %810 = vmatprep.subr.bf16.mxu0 0
        %811 = vmatpush1.bf16.msra.mxu0 0
        %812 = vmatprep.subr.bf16.mxu0 0
        %813 = vmatpush1.bf16.msra.mxu0 0
        %814 = vmatprep.subr.bf16.mxu0 0
        %815 = vmatpush1.bf16.msra.mxu0 0
        %816 = vmatprep.subr.bf16.mxu0 0
        %817 = vmatpush1.bf16.msra.mxu0 0
        %818 = vmatprep.mubr.bf16.mxu0 0
        %819 = vmatmul.mubr.bf16.gmra.mrb[0].mxu0 %v780
        %v820 = vpop.f32.mrb[0].mxu0
        %v821 = vadd.f32 0.0, %v820
        %v822 = vpop.f32.mrb[0].mxu0
        %v823 = vpop.f32.mrb[0].mxu0
        %v824 = vpop.f32.mrb[0].mxu0
        %825 = vdwg.mxu0
        %v826 = vpack.c.bf16 %v821, %v821
        %vm827 = vcmask 125952
        %828 = vst.msk [vmem:[#allocation2] sm:$0xf] %vm827, %v826
        %830 = vrot.lane.b32.xlu0 %v640, 112
        %v831 = vpop.permute.xlu0 %830
        %832 = vrot.lane.b32.xlu0 %v707, 112
        %v833 = vpop.permute.xlu0 %832
        %v835 = vsel %vm708, %v831, 0
        %v838 = vsel %vm708, %v833, 0
        %840 = vmatprep.subr.bf16.mxu0 0
        %841 = vmatpush1.bf16.xpose.msra.mxu0 %v838
        %842 = vmatprep.subr.bf16.mxu0 0
        %843 = vmatpush1.bf16.xpose.msra.mxu0 0
        %844 = vmatprep.subr.bf16.mxu0 0
        %845 = vmatpush1.bf16.xpose.msra.mxu0 0
        %846 = vmatprep.subr.bf16.mxu0 0
        %847 = vmatpush1.bf16.xpose.msra.mxu0 0
        %848 = vmatprep.subr.bf16.mxu0 0
        %849 = vmatpush1.bf16.xpose.msra.mxu0 0
        %850 = vmatprep.subr.bf16.mxu0 0
        %851 = vmatpush1.bf16.xpose.msra.mxu0 0
        %852 = vmatprep.subr.bf16.mxu0 0
        %853 = vmatpush1.bf16.xpose.msra.mxu0 0
        %854 = vmatprep.subr.bf16.mxu0 0
        %855 = vmatpush1.bf16.xpose.msra.mxu0 0
        %856 = vmatprep.subr.bf16.mxu0 0
        %857 = vmatpush1.bf16.xpose.msra.mxu0 0
        %858 = vmatprep.subr.bf16.mxu0 0
        %859 = vmatpush1.bf16.xpose.msra.mxu0 0
        %860 = vmatprep.subr.bf16.mxu0 0
        %861 = vmatpush1.bf16.xpose.msra.mxu0 0
        %862 = vmatprep.subr.bf16.mxu0 0
        %863 = vmatpush1.bf16.xpose.msra.mxu0 0
        %864 = vmatprep.subr.bf16.mxu0 0
        %865 = vmatpush1.bf16.xpose.msra.mxu0 0
        %866 = vmatprep.subr.bf16.mxu0 0
        %867 = vmatpush1.bf16.xpose.msra.mxu0 0
        %868 = vmatprep.subr.bf16.mxu0 0
        %869 = vmatpush1.bf16.xpose.msra.mxu0 0
        %870 = vmatprep.subr.bf16.mxu0 0
        %871 = vmatpush1.bf16.xpose.msra.mxu0 0
        %872 = vmatprep.mubr.bf16.mxu0 0
        %873 = vmatmul.mubr.bf16.gmra.mrb[0].mxu0 %v835
        %v874 = vpop.f32.mrb[0].mxu0
        %v875 = vadd.f32 0.0, %v874
        %v876 = vpop.f32.mrb[0].mxu0
        %v877 = vpop.f32.mrb[0].mxu0
        %v878 = vpop.f32.mrb[0].mxu0
        %879 = vdwg.mxu0
        %v880 = vmul.f32 %v875, 0.25
        %v881 = vadd.f32 %v880, %v760
        %v882 = vsel %vm763, %v881, -inf
        %883 = vmax.xlane.f32.xlu0 %v882
        %v884 = vpop.xlane.xlu0 %883
        %v885 = vsub.f32 %v881, %v884
        %v886 = vmul.f32 %v885, 1.442695
        %v887 = vpow.pop %v886
        %v888 = vsel %vm763, %v887, 0.0
        %889 = vadd.xlane.f32.xlu0 %v888
        %v890 = vpop.xlane.xlu0 %889
        %v891 = vrcp.pop %v890
        %v892 = vmul.f32 %v887, %v891
        %v893 = vpack.c.bf16 %v892, %v892
        %894 = vrot.lane.b32.xlu0 %v707, 80
        %v895 = vpop.permute.xlu0 %894
        %v897 = vsel %vm763, %v893, 0
        %v900 = vsel %vm782, %v895, 0
        %902 = vmatprep.subr.bf16.mxu0 0
        %903 = vmatpush1.bf16.msra.mxu0 %v900
        %904 = vmatprep.subr.bf16.mxu0 0
        %905 = vmatpush1.bf16.msra.mxu0 0
        %906 = vmatprep.subr.bf16.mxu0 0
        %907 = vmatpush1.bf16.msra.mxu0 0
        %908 = vmatprep.subr.bf16.mxu0 0
        %909 = vmatpush1.bf16.msra.mxu0 0
        %910 = vmatprep.subr.bf16.mxu0 0
        %911 = vmatpush1.bf16.msra.mxu0 0
        %912 = vmatprep.subr.bf16.mxu0 0
        %913 = vmatpush1.bf16.msra.mxu0 0
        %914 = vmatprep.subr.bf16.mxu0 0
        %915 = vmatpush1.bf16.msra.mxu0 0
        %916 = vmatprep.subr.bf16.mxu0 0
        %917 = vmatpush1.bf16.msra.mxu0 0
        %918 = vmatprep.subr.bf16.mxu0 0
        %919 = vmatpush1.bf16.msra.mxu0 0
        %920 = vmatprep.subr.bf16.mxu0 0
        %921 = vmatpush1.bf16.msra.mxu0 0
        %922 = vmatprep.subr.bf16.mxu0 0
        %923 = vmatpush1.bf16.msra.mxu0 0
        %924 = vmatprep.subr.bf16.mxu0 0
        %925 = vmatpush1.bf16.msra.mxu0 0
        %926 = vmatprep.subr.bf16.mxu0 0
        %927 = vmatpush1.bf16.msra.mxu0 0
        %928 = vmatprep.subr.bf16.mxu0 0
        %929 = vmatpush1.bf16.msra.mxu0 0
        %930 = vmatprep.subr.bf16.mxu0 0
        %931 = vmatpush1.bf16.msra.mxu0 0
        %932 = vmatprep.subr.bf16.mxu0 0
        %933 = vmatpush1.bf16.msra.mxu0 0
        %934 = vmatprep.mubr.bf16.mxu0 0
        %935 = vmatmul.mubr.bf16.gmra.mrb[0].mxu0 %v897
        %v936 = vpop.f32.mrb[0].mxu0
        %v937 = vadd.f32 0.0, %v936
        %v938 = vpop.f32.mrb[0].mxu0
        %v939 = vpop.f32.mrb[0].mxu0
        %v940 = vpop.f32.mrb[0].mxu0
        %941 = vdwg.mxu0
        %v942 = vpack.c.bf16 %v937, %v937
        %v944 = vunpack.c.l.b16 %v942
        %v945 = vpack.c.b16 %v944, %v944
        %946 = vrot.lane.b32.xlu0 %v945, 16
        %v947 = vpop.permute.xlu0 %946
        %vm949 = vcmask 257152
        %950 = vst.msk [vmem:[#allocation2] sm:$0xf] %vm949, %v947
        %v951 = vld [vmem:[#allocation2] sm:$0xf]
        %v952 = vld [vmem:[%s8] sm:$0xf]
        %v953 = vld [vmem:[%s8 + $0x4] sm:$0xf]
        %v954 = vld [vmem:[%s8 + $0x8] sm:$0xf]
        %v955 = vld [vmem:[%s8 + $0xc] sm:$0xf]
        %v956 = vld [vmem:[%s9] sm:$0x1]
        %v958 = vlaneseq
        %v959 = vshrl.u32 %v958, 7
        %v960 = vsub.s32 0, %v959
        %v961 = vrot.slane %v956, %v960
        %v967 = vunpack.c.l.b16 %v952
        %v968 = vunpack.c.l.b16 %v953
        %v969 = vunpack.c.l.b16 %v954
        %v970 = vunpack.c.l.b16 %v955
        %v971 = vpack.c.b16 %v968, %v967
        %v972 = vpack.c.b16 %v970, %v969
        %v976 = vsel %vm596, %v951, 0
        %978 = vmatprep.subr.bf16.mxu0 0
        %979 = vmatpush1.bf16.msra.mxu0 %v971
        %980 = vmatprep.subr.bf16.mxu0 0
        %981 = vmatpush1.bf16.msra.mxu0 %v972
        %982 = vmatprep.subr.bf16.mxu0 0
        %983 = vmatpush1.bf16.msra.mxu0 0
        %984 = vmatprep.subr.bf16.mxu0 0
        %985 = vmatpush1.bf16.msra.mxu0 0
        %986 = vmatprep.subr.bf16.mxu0 0
        %987 = vmatpush1.bf16.msra.mxu0 0
        %988 = vmatprep.subr.bf16.mxu0 0
        %989 = vmatpush1.bf16.msra.mxu0 0
        %990 = vmatprep.subr.bf16.mxu0 0
        %991 = vmatpush1.bf16.msra.mxu0 0
        %992 = vmatprep.subr.bf16.mxu0 0
        %993 = vmatpush1.bf16.msra.mxu0 0
        %994 = vmatprep.subr.bf16.mxu0 0
        %995 = vmatpush1.bf16.msra.mxu0 0
        %996 = vmatprep.subr.bf16.mxu0 0
        %997 = vmatpush1.bf16.msra.mxu0 0
        %998 = vmatprep.subr.bf16.mxu0 0
        %999 = vmatpush1.bf16.msra.mxu0 0
        %1000 = vmatprep.subr.bf16.mxu0 0
        %1001 = vmatpush1.bf16.msra.mxu0 0
        %1002 = vmatprep.subr.bf16.mxu0 0
        %1003 = vmatpush1.bf16.msra.mxu0 0
        %1004 = vmatprep.subr.bf16.mxu0 0
        %1005 = vmatpush1.bf16.msra.mxu0 0
        %1006 = vmatprep.subr.bf16.mxu0 0
        %1007 = vmatpush1.bf16.msra.mxu0 0
        %1008 = vmatprep.subr.bf16.mxu0 0
        %1009 = vmatpush1.bf16.msra.mxu0 0
        %1010 = vmatprep.mubr.bf16.mxu0 0
        %1011 = vmatmul.mubr.bf16.gmra.mrb[0].mxu0 %v976
        %v1012 = vpop.f32.mrb[0].mxu0
        %v1013 = vadd.f32 %v961, %v1012
        %v1014 = vpop.f32.mrb[0].mxu0
        %v1015 = vpop.f32.mrb[0].mxu0
        %v1016 = vpop.f32.mrb[0].mxu0
        %1017 = vdwg.mxu0
        %v1018 = vunpack.c.l.bf16 %v568
        %v1019 = vadd.f32 %v1013, %v1018
        %v1020 = vsel %vm596, %v1019, 0.0
        %1021 = vadd.xlane.f32.xlu0 %v1020
        %v1022 = vpop.xlane.xlu0 %1021
        %v1023 = vrcp.pop 32.0
        %v1024 = vmul.f32 %v1022, %v1023
        %v1025 = vsub.f32 %v1019, %v1024
        %v1026 = vmul.f32 %v1025, %v1025
        %v1027 = vsel %vm596, %v1026, 0.0
        %1028 = vadd.xlane.f32.xlu0 %v1027
        %v1029 = vpop.xlane.xlu0 %1028
        %v1030 = vmul.f32 %v1029, %v1023
        %v1031 = vadd.f32 %v1030, 1e-05
        %v1032 = vrsqrt.pop %v1031
        %v1033 = vmul.f32 %v1025, %v1032
        %v1034 = vld [vmem:[%s10] sm:$0x1]
        %v1036 = vlaneseq
        %v1037 = vshrl.u32 %v1036, 7
        %v1038 = vsub.s32 0, %v1037
        %v1039 = vrot.slane %v1034, %v1038
        %v1041 = vmul.f32 %v1033, %v1039
        %v1042 = vld [vmem:[%s11] sm:$0x1]
        %v1044 = vlaneseq
        %v1045 = vshrl.u32 %v1044, 7
        %v1046 = vsub.s32 0, %v1045
        %v1047 = vrot.slane %v1042, %v1046
        %v1049 = vadd.f32 %v1041, %v1047
        %v1050 = vld [vmem:[%s566] sm:$0xff]
        %vm1051 = vcmp.gt.f32.partialorder %v1050, 0.5
        %v1052 = vsel %vm1051, 1, 0
        %1053 = vset.pattern.permute.xlu0 0
        %1054 = vperm.xlu0 %1053, %v1052
        %v1055 = vpop.permute.xlu0 %1054
        %vm1056 = vcmp.eq.s32.totalorder %v1055, 1
        %v1057 = vsel %vm1056, 0.0, %v1049
        %v1058 = vpack.c.bf16 %v1057, %v1057
        %vm1059 = vcmask 257024
        %1060 = vst.msk [vmem:[%s559] sm:$0xf] %vm1059, %v1058
        %s1061 = sand.u32 %s331, 1
        %s1062 = scalar_lea.sflag [#allocation5], %s1061
        %s1063 = sand.u32 %s331, 1
        %s1064 = smul.addr %s1063, 4
        %s1065 = scalar_lea.vmem [#allocation12], %s1064
        // Predicated region
        $region89: #{tpu_custom_call.1} parent=67 // pred_check
          %p1066 = pneg %p341
        $region90: #{tpu_custom_call.1} parent=67 // pred_check_branch
          %1068 = sbr.rel (%p1066) target = $region92
        $region91: #{tpu_custom_call.1} parent=67 // pred_region
          %s1070 = ssub.s32 64, 64
          %1071 = vsyncadd %s1062, %s1070
          %s1072 = sadd.s32 %s38, %s37
          %s1073 = smul.addr %s1072, 64
          %s1074 = scalar_lea.hbm %s12, %s1073
          %s1076 = sshll.u32 %s1065, 4
          %s1077 = int_to_ptr.vmem [resolvable:$true] %s1076
          %1079 = dma.vmem_to_hbm [thread:$0]  %s1077, 64, %s1074, %s1062
        $region92: #{tpu_custom_call.1} parent=67 // pred_fallthru
          _
      $region68: #{tpu_custom_call.1} parent=5 // pred_fallthru
        _
      %p1080 = scmp.le.s32.totalorder 2, %s28
      // Predicated region
      $region93: #{tpu_custom_call.1} parent=5 // pred_check
        %p1081 = pneg %p1080
      $region94: #{tpu_custom_call.1} parent=5 // pred_check_branch
        %1083 = sbr.rel (%p1081) target = $region96
      $region95: #{tpu_custom_call.1} parent=5 // pred_region
        %s1084 = ssub.s32 %s28, 2
        // Predicated region
        $region97: #{tpu_custom_call.1} parent=95 // pred_check
          %p1085 = pneg %p347
        $region98: #{tpu_custom_call.1} parent=95 // pred_check_branch
          %1087 = sbr.rel (%p1085) target = $region100
        $region99: #{tpu_custom_call.1} parent=95 // pred_region
          %s1088 = sand.u32 %s332, 1
          %s1089 = scalar_lea.sflag [#allocation5], %s1088
          %s1090 = sand.u32 %s332, 1
          %s1091 = smul.addr %s1090, 4
          %s1092 = scalar_lea.vmem [#allocation12], %s1091
          %1093 = dma.done %s1089, 64
        $region100: #{tpu_custom_call.1} parent=95 // pred_fallthru
          _
      $region96: #{tpu_custom_call.1} parent=5 // pred_fallthru
        _
    $region6: #{tpu_custom_call.1} parent=1 // loop_footer
      %s32 = sadd.s32 1, %s28
    $region7: #{tpu_custom_call.1} parent=1 // loop_footer_branch
      %27 = sbr.rel target = $region3
    $region8: #{tpu_custom_call.1} parent=1 // loop_exit
      _
    %1094 = vsyncpa [#allocation4], 1
    %s1095 = scalar_lea.sflag [#allocation4], 1
    %1096 = vsyncpa %s1095, 1
    %1097 = vsyncpa [#allocation7], 1
    %s1098 = scalar_lea.sflag [#allocation7], 1
    %1099 = vsyncpa %s1098, 1
    %1100 = vsyncpa [#allocation10], 1
    %1101 = vsyncpa [#allocation5], 1
    %s1102 = scalar_lea.sflag [#allocation5], 1
    %1103 = vsyncpa %s1102, 1

</llo_original>
